<compile_context>
chip_gen: v7x
topology: tpu7x:2x2x1
jax: 0.10.0
libtpu: 0.0.40
codegen_flags: <defaults>
</compile_context>

<pallas_src>
import numpy as np
import jax
import jax.numpy as jnp
from jax.experimental import pallas as pl
from jax.experimental.pallas import tpu as pltpu


# ---------------------------------------------------------------------------
# Operator-matrix construction (deterministic, in-script)
# ---------------------------------------------------------------------------
def _bicubic_upsample_matrix(n: int, scale: int = 2, a: float = -0.75) -> np.ndarray:
    """[scale*n, n] matrix reproducing torch.nn.Upsample(bicubic, align_corners=False)."""
    def c1(x):  # |x| <= 1
        return ((a + 2.0) * x - (a + 3.0)) * x * x + 1.0

    def c2(x):  # 1 < |x| < 2
        return ((a * x - 5.0 * a) * x + 8.0 * a) * x - 4.0 * a

    n_out = n * scale
    U = np.zeros((n_out, n), dtype=np.float64)
    for o in range(n_out):
        coord = (o + 0.5) / scale - 0.5
        i0 = int(np.floor(coord))
        t = coord - i0
        w = [c2(t + 1.0), c1(t), c1(1.0 - t), c2(2.0 - t)]
        for k in range(4):
            idx = min(max(i0 - 1 + k, 0), n - 1)
            U[o, idx] += w[k]
    return U


def _smooth_matrix(m: int) -> np.ndarray:
    """[m, m] matrix: 1D conv with [1,2,1]/4 and replication padding of 1."""
    ker = np.array([1.0, 2.0, 1.0]) / 4.0
    S = np.zeros((m, m), dtype=np.float64)
    for o in range(m):
        for k in range(3):
            idx = min(max(o - 1 + k, 0), m - 1)
            S[o, idx] += ker[k]
    return S


def _build_operator(n: int, scale: int = 2) -> np.ndarray:
    """A = S @ U : combined (upsample then smooth) operator along one axis."""
    U = _bicubic_upsample_matrix(n, scale)
    S = _smooth_matrix(n * scale)
    return (S @ U).astype(np.float32)


# ---------------------------------------------------------------------------
# Tiling heuristics
# ---------------------------------------------------------------------------
def _choose_plane_batch(bc: int, h: int, w: int, budget_bytes: int, max_p: int = 32) -> int:
    """Largest divisor P of bc whose per-step VMEM footprint fits the budget,
    keeping >= 2 grid steps (so v7x's two TensorCores both get work)."""
    ho, wo = 2 * h, 2 * w
    const_bytes = (ho * h + w * wo) * 4 * 2        # operators (conservatively x2)
    best = 1
    for p in range(1, min(bc, max_p) + 1):
        if bc % p:
            continue
        if bc >= 2 and bc // p < 2:                # keep the parallel axis >= 2
            continue
        blk_bytes = (p * h * w * 2                 # x block, double-buffered
                     + p * ho * wo * 2             # out block, double-buffered
                     + p * h * wo) * 4             # intermediate t
        if const_bytes + blk_bytes <= budget_bytes:
            best = p
    return best


# ---------------------------------------------------------------------------
# Pallas kernel: per grid step, P planes:  y[p] = A_H @ x[p] @ A_W^T
# ---------------------------------------------------------------------------
def _make_kernel(P: int, H: int, W: int, Ho: int, Wo: int,
                 fuse_w: bool, compute_dtype):
    def kernel(ah_ref, awt_ref, x_ref, o_ref):
        ah = ah_ref[...].astype(compute_dtype)      # (Ho, H)
        awt = awt_ref[...].astype(compute_dtype)    # (W, Wo)  (pre-transposed)
        if fuse_w:
            # x_ref is (P*H, W): one fused MXU matmul for the W-side of all P planes.
            x2d = x_ref[...].astype(compute_dtype)
            t = jnp.dot(x2d, awt, preferred_element_type=jnp.float32)   # (P*H, Wo)
            for p in range(P):                       # short, statically unrolled
                tp = t[p * H:(p + 1) * H, :].astype(compute_dtype)       # (H, Wo)
                yp = jnp.dot(ah, tp, preferred_element_type=jnp.float32)  # (Ho, Wo)
                o_ref[p] = yp.astype(o_ref.dtype)
        else:
            # Fallback for H not a multiple of 8: per-plane double matmul.
            for p in range(P):
                xp = x_ref[p].astype(compute_dtype)                      # (H, W)
                tp = jnp.dot(xp, awt,
                             preferred_element_type=jnp.float32).astype(compute_dtype)
                yp = jnp.dot(ah, tp, preferred_element_type=jnp.float32)
                o_ref[p] = yp.astype(o_ref.dtype)
    return kernel


def _build_call(BC: int, P: int, H: int, W: int, Ho: int, Wo: int,
                out_dtype, compute_dtype, fuse_w: bool,
                single_buffer_consts: bool):
    kernel = _make_kernel(P, H, W, Ho, Wo, fuse_w, compute_dtype)

    # Constant operators: constant index_map; single-buffer them to halve their
    # VMEM footprint (matters for large planes, especially v7x's 64 MiB VMEM).
    const_kw = dict(pipeline_mode=pl.Buffered(1)) if single_buffer_consts else {}
    ah_spec = pl.BlockSpec((Ho, H), lambda i: (0, 0), **const_kw)
    awt_spec = pl.BlockSpec((W, Wo), lambda i: (0, 0), **const_kw)

    if fuse_w:
        x_spec = pl.BlockSpec((P * H, W), lambda i: (i, 0))
    else:
        x_spec = pl.BlockSpec((P, H, W), lambda i: (i, 0, 0))
    o_spec = pl.BlockSpec((P, Ho, Wo), lambda i: (i, 0, 0))

    return pl.pallas_call(
        kernel,
        out_shape=jax.ShapeDtypeStruct((BC, Ho, Wo), out_dtype),
        grid_spec=pltpu.PrefetchScalarGridSpec(
            num_scalar_prefetch=0,
            grid=(BC // P,),
            in_specs=[ah_spec, awt_spec, x_spec],
            out_specs=o_spec,
        ),
        compiler_params=pltpu.CompilerParams(
            dimension_semantics=("parallel",),     # shards planes across TCs on v7x
            vmem_limit_bytes=64 * 1024 * 1024,
        ),
    )


def upsample_rgb(x: jax.Array, *, use_bf16_matmul: bool = False) -> jax.Array:
    """x: (B, C, H, W) float32  ->  (B, C, 2H, 2W) float32.

    use_bf16_matmul=True feeds bf16 operands to the MXU (f32 accumulation) for
    higher throughput on v6e/v7x; it changes numerics slightly, so it is off by
    default.
    """
    B, C, H, W = x.shape
    Ho, Wo = 2 * H, 2 * W
    BC = B * C

    a_h = jnp.asarray(_build_operator(H))                                  # (Ho, H)
    a_wT = jnp.asarray(np.ascontiguousarray(_build_operator(W).T))         # (W, Wo)

    P = _choose_plane_batch(BC, H, W, budget_bytes=40 * 1024 * 1024)
    compute_dtype = jnp.bfloat16 if use_bf16_matmul else x.dtype

    fuse_w = (H % 8 == 0)
    x_in = x.reshape(BC * H, W) if fuse_w else x.reshape(BC, H, W)

    # Prefer single-buffered constant operators; fall back transparently if the
    # installed Pallas version does not support pipeline_mode=pl.Buffered(1).
    try:
        call = _build_call(BC, P, H, W, Ho, Wo, x.dtype, compute_dtype,
                           fuse_w, single_buffer_consts=True)
        out_flat = call(a_h, a_wT, x_in)
    except Exception:
        call = _build_call(BC, P, H, W, Ho, Wo, x.dtype, compute_dtype,
                           fuse_w, single_buffer_consts=False)
        out_flat = call(a_h, a_wT, x_in)

    return out_flat.reshape(B, C, Ho, Wo)


# ---------------------------------------------------------------------------
if __name__ == "__main__":
    key = jax.random.PRNGKey(0)
    B, C, H, W = 2, 4, 16, 16
    x = jax.random.normal(key, (B, C, H, W), dtype=jnp.float32)

    y = upsample_rgb(x)
    y = jax.block_until_ready(y)

    # Sanity check against a plain-JAX application of the same linear operator.
    a_h = jnp.asarray(_build_operator(H))
    a_w = jnp.asarray(_build_operator(W))
    y_ref = jnp.einsum("oh,bchw,pw->bcop", a_h, x, a_w)
    assert y.shape == (B, C, 2 * H, 2 * W)
    np.testing.assert_allclose(np.asarray(y), np.asarray(y_ref), rtol=1e-5, atol=1e-5)

    print("KERNEL_OK")
</pallas_src>

<mosaic_0001>
module attributes {stable_mosaic.version = 11 : i64} {
  func.func @kernel(%arg0: i32, %arg1: memref<32x16xf32, #tpu.memory_space<vmem>>, %arg2: memref<16x32xf32, #tpu.memory_space<vmem>>, %arg3: memref<64x16xf32, #tpu.memory_space<vmem>>, %arg4: memref<4x32x32xf32, #tpu.memory_space<vmem>>) attributes {dimension_semantics = [#tpu.dimension_semantics<parallel>], iteration_bounds = array<i64: 2>, scalar_prefetch = 0 : i64, scratch_operands = 0 : i64, tpu.core_type = #tpu.core_type<tc>, window_params = [{pipeline_mode = #tpu.pipeline_mode<synchronous>, transform_indices = @transform_0, window_bounds = array<i64: 32, 16>}, {pipeline_mode = #tpu.pipeline_mode<synchronous>, transform_indices = @transform_1, window_bounds = array<i64: 16, 32>}, {transform_indices = @transform_2, window_bounds = array<i64: 64, 16>}, {transform_indices = @transform_3, window_bounds = array<i64: 4, 32, 32>}]} {
    %c0 = arith.constant 0 : index
    %c0_0 = arith.constant 0 : index
    %0 = vector.load %arg1[%c0, %c0_0] : memref<32x16xf32, #tpu.memory_space<vmem>>, vector<32x16xf32>
    %c0_1 = arith.constant 0 : index
    %c0_2 = arith.constant 0 : index
    %1 = vector.load %arg2[%c0_1, %c0_2] : memref<16x32xf32, #tpu.memory_space<vmem>>, vector<16x32xf32>
    %c0_3 = arith.constant 0 : index
    %c0_4 = arith.constant 0 : index
    %2 = vector.load %arg3[%c0_3, %c0_4] : memref<64x16xf32, #tpu.memory_space<vmem>>, vector<64x16xf32>
    %cst = arith.constant dense<0.000000e+00> : vector<64x32xf32>
    %3 = tpu.matmul %2, %1, %cst {dimension_numbers = #tpu.dot_dimension_numbers<[1], [0], [0], [1], [0, 0, 1, 1], [], []>} : vector<64x16xf32>, vector<16x32xf32>, vector<64x32xf32> -> vector<64x32xf32>
    %4 = vector.extract_strided_slice %3 {offsets = [0, 0], sizes = [16, 32], strides = [1, 1]} : vector<64x32xf32> to vector<16x32xf32>
    %cst_5 = arith.constant dense<0.000000e+00> : vector<32x32xf32>
    %5 = tpu.matmul %0, %4, %cst_5 {dimension_numbers = #tpu.dot_dimension_numbers<[1], [0], [0], [1], [0, 0, 1, 1], [], []>} : vector<32x16xf32>, vector<16x32xf32>, vector<32x32xf32> -> vector<32x32xf32>
    %c0_6 = arith.constant 0 : index
    %c0_7 = arith.constant 0 : index
    %c0_8 = arith.constant 0 : index
    %6 = vector.load %arg4[%c0_6, %c0_7, %c0_8] : memref<4x32x32xf32, #tpu.memory_space<vmem>>, vector<1x32x32xf32>
    %7 = vector.shape_cast %6 : vector<1x32x32xf32> to vector<32x32xf32>
    %8 = vector.shape_cast %5 : vector<32x32xf32> to vector<1x32x32xf32>
    tpu.vector_store %arg4[%c0_6, %c0_7, %c0_8], %8 {strides = array<i32>} : memref<4x32x32xf32, #tpu.memory_space<vmem>>, vector<1x32x32xf32>,
    %9 = vector.extract_strided_slice %3 {offsets = [16, 0], sizes = [16, 32], strides = [1, 1]} : vector<64x32xf32> to vector<16x32xf32>
    %cst_9 = arith.constant dense<0.000000e+00> : vector<32x32xf32>
    %10 = tpu.matmul %0, %9, %cst_9 {dimension_numbers = #tpu.dot_dimension_numbers<[1], [0], [0], [1], [0, 0, 1, 1], [], []>} : vector<32x16xf32>, vector<16x32xf32>, vector<32x32xf32> -> vector<32x32xf32>
    %c1 = arith.constant 1 : index
    %c0_10 = arith.constant 0 : index
    %c0_11 = arith.constant 0 : index
    %11 = vector.load %arg4[%c1, %c0_10, %c0_11] : memref<4x32x32xf32, #tpu.memory_space<vmem>>, vector<1x32x32xf32>
    %12 = vector.shape_cast %11 : vector<1x32x32xf32> to vector<32x32xf32>
    %13 = vector.shape_cast %10 : vector<32x32xf32> to vector<1x32x32xf32>
    tpu.vector_store %arg4[%c1, %c0_10, %c0_11], %13 {strides = array<i32>} : memref<4x32x32xf32, #tpu.memory_space<vmem>>, vector<1x32x32xf32>,
    %14 = vector.extract_strided_slice %3 {offsets = [32, 0], sizes = [16, 32], strides = [1, 1]} : vector<64x32xf32> to vector<16x32xf32>
    %cst_12 = arith.constant dense<0.000000e+00> : vector<32x32xf32>
    %15 = tpu.matmul %0, %14, %cst_12 {dimension_numbers = #tpu.dot_dimension_numbers<[1], [0], [0], [1], [0, 0, 1, 1], [], []>} : vector<32x16xf32>, vector<16x32xf32>, vector<32x32xf32> -> vector<32x32xf32>
    %c2 = arith.constant 2 : index
    %c0_13 = arith.constant 0 : index
    %c0_14 = arith.constant 0 : index
    %16 = vector.load %arg4[%c2, %c0_13, %c0_14] : memref<4x32x32xf32, #tpu.memory_space<vmem>>, vector<1x32x32xf32>
    %17 = vector.shape_cast %16 : vector<1x32x32xf32> to vector<32x32xf32>
    %18 = vector.shape_cast %15 : vector<32x32xf32> to vector<1x32x32xf32>
    tpu.vector_store %arg4[%c2, %c0_13, %c0_14], %18 {strides = array<i32>} : memref<4x32x32xf32, #tpu.memory_space<vmem>>, vector<1x32x32xf32>,
    %19 = vector.extract_strided_slice %3 {offsets = [48, 0], sizes = [16, 32], strides = [1, 1]} : vector<64x32xf32> to vector<16x32xf32>
    %cst_15 = arith.constant dense<0.000000e+00> : vector<32x32xf32>
    %20 = tpu.matmul %0, %19, %cst_15 {dimension_numbers = #tpu.dot_dimension_numbers<[1], [0], [0], [1], [0, 0, 1, 1], [], []>} : vector<32x16xf32>, vector<16x32xf32>, vector<32x32xf32> -> vector<32x32xf32>
    %c3 = arith.constant 3 : index
    %c0_16 = arith.constant 0 : index
    %c0_17 = arith.constant 0 : index
    %21 = vector.load %arg4[%c3, %c0_16, %c0_17] : memref<4x32x32xf32, #tpu.memory_space<vmem>>, vector<1x32x32xf32>
    %22 = vector.shape_cast %21 : vector<1x32x32xf32> to vector<32x32xf32>
    %23 = vector.shape_cast %20 : vector<32x32xf32> to vector<1x32x32xf32>
    tpu.vector_store %arg4[%c3, %c0_16, %c0_17], %23 {strides = array<i32>} : memref<4x32x32xf32, #tpu.memory_space<vmem>>, vector<1x32x32xf32>,
    return
  }
  func.func @transform_0(%arg0: i32) -> (i32, i32) {
    %c0_i32 = arith.constant 0 : i32
    %c0_i32_0 = arith.constant 0 : i32
    %c0_i32_1 = arith.constant 0 : i32
    return %c0_i32, %c0_i32_0 : i32, i32
  }
  func.func @transform_1(%arg0: i32) -> (i32, i32) {
    %c0_i32 = arith.constant 0 : i32
    %c0_i32_0 = arith.constant 0 : i32
    %c0_i32_1 = arith.constant 0 : i32
    return %c0_i32, %c0_i32_0 : i32, i32
  }
  func.func @transform_2(%arg0: i32) -> (i32, i32) {
    %c0_i32 = arith.constant 0 : i32
    %c0_i32_0 = arith.constant 0 : i32
    return %arg0, %c0_i32 : i32, i32
  }
  func.func @transform_3(%arg0: i32) -> (i32, i32, i32) {
    %c0_i32 = arith.constant 0 : i32
    %c0_i32_0 = arith.constant 0 : i32
    %c0_i32_1 = arith.constant 0 : i32
    return %arg0, %c0_i32, %c0_i32_0 : i32, i32, i32
  }
}

module attributes {stable_mosaic.version = 11 : i64} {
  func.func @kernel(%arg0: i32, %arg1: memref<32x16xf32, #tpu.memory_space<vmem>>, %arg2: memref<16x32xf32, #tpu.memory_space<vmem>>, %arg3: memref<64x16xf32, #tpu.memory_space<vmem>>, %arg4: memref<4x32x32xf32, #tpu.memory_space<vmem>>) attributes {dimension_semantics = [#tpu.dimension_semantics<parallel>], iteration_bounds = array<i64: 2>, scalar_prefetch = 0 : i64, scratch_operands = 0 : i64, tpu.core_type = #tpu.core_type<tc>, window_params = [{pipeline_mode = #tpu.pipeline_mode<synchronous>, transform_indices = @transform_0, window_bounds = array<i64: 32, 16>}, {pipeline_mode = #tpu.pipeline_mode<synchronous>, transform_indices = @transform_1, window_bounds = array<i64: 16, 32>}, {transform_indices = @transform_2, window_bounds = array<i64: 64, 16>}, {transform_indices = @transform_3, window_bounds = array<i64: 4, 32, 32>}]} {
    %c0 = arith.constant 0 : index
    %c0_0 = arith.constant 0 : index
    %0 = vector.load %arg1[%c0, %c0_0] : memref<32x16xf32, #tpu.memory_space<vmem>>, vector<32x16xf32>
    %c0_1 = arith.constant 0 : index
    %c0_2 = arith.constant 0 : index
    %1 = vector.load %arg2[%c0_1, %c0_2] : memref<16x32xf32, #tpu.memory_space<vmem>>, vector<16x32xf32>
    %c0_3 = arith.constant 0 : index
    %c0_4 = arith.constant 0 : index
    %2 = vector.load %arg3[%c0_3, %c0_4] : memref<64x16xf32, #tpu.memory_space<vmem>>, vector<64x16xf32>
    %cst = arith.constant dense<0.000000e+00> : vector<64x32xf32>
    %3 = tpu.matmul %2, %1, %cst {dimension_numbers = #tpu.dot_dimension_numbers<[1], [0], [0], [1], [0, 0, 1, 1], [], []>} : vector<64x16xf32>, vector<16x32xf32>, vector<64x32xf32> -> vector<64x32xf32>
    %4 = vector.extract_strided_slice %3 {offsets = [0, 0], sizes = [16, 32], strides = [1, 1]} : vector<64x32xf32> to vector<16x32xf32>
    %cst_5 = arith.constant dense<0.000000e+00> : vector<32x32xf32>
    %5 = tpu.matmul %0, %4, %cst_5 {dimension_numbers = #tpu.dot_dimension_numbers<[1], [0], [0], [1], [0, 0, 1, 1], [], []>} : vector<32x16xf32>, vector<16x32xf32>, vector<32x32xf32> -> vector<32x32xf32>
    %c0_6 = arith.constant 0 : index
    %c0_7 = arith.constant 0 : index
    %c0_8 = arith.constant 0 : index
    %6 = vector.load %arg4[%c0_6, %c0_7, %c0_8] : memref<4x32x32xf32, #tpu.memory_space<vmem>>, vector<1x32x32xf32>
    %7 = vector.shape_cast %6 : vector<1x32x32xf32> to vector<32x32xf32>
    %8 = vector.shape_cast %5 : vector<32x32xf32> to vector<1x32x32xf32>
    tpu.vector_store %arg4[%c0_6, %c0_7, %c0_8], %8 {strides = array<i32>} : memref<4x32x32xf32, #tpu.memory_space<vmem>>, vector<1x32x32xf32>,
    %9 = vector.extract_strided_slice %3 {offsets = [16, 0], sizes = [16, 32], strides = [1, 1]} : vector<64x32xf32> to vector<16x32xf32>
    %cst_9 = arith.constant dense<0.000000e+00> : vector<32x32xf32>
    %10 = tpu.matmul %0, %9, %cst_9 {dimension_numbers = #tpu.dot_dimension_numbers<[1], [0], [0], [1], [0, 0, 1, 1], [], []>} : vector<32x16xf32>, vector<16x32xf32>, vector<32x32xf32> -> vector<32x32xf32>
    %c1 = arith.constant 1 : index
    %c0_10 = arith.constant 0 : index
    %c0_11 = arith.constant 0 : index
    %11 = vector.load %arg4[%c1, %c0_10, %c0_11] : memref<4x32x32xf32, #tpu.memory_space<vmem>>, vector<1x32x32xf32>
    %12 = vector.shape_cast %11 : vector<1x32x32xf32> to vector<32x32xf32>
    %13 = vector.shape_cast %10 : vector<32x32xf32> to vector<1x32x32xf32>
    tpu.vector_store %arg4[%c1, %c0_10, %c0_11], %13 {strides = array<i32>} : memref<4x32x32xf32, #tpu.memory_space<vmem>>, vector<1x32x32xf32>,
    %14 = vector.extract_strided_slice %3 {offsets = [32, 0], sizes = [16, 32], strides = [1, 1]} : vector<64x32xf32> to vector<16x32xf32>
    %cst_12 = arith.constant dense<0.000000e+00> : vector<32x32xf32>
    %15 = tpu.matmul %0, %14, %cst_12 {dimension_numbers = #tpu.dot_dimension_numbers<[1], [0], [0], [1], [0, 0, 1, 1], [], []>} : vector<32x16xf32>, vector<16x32xf32>, vector<32x32xf32> -> vector<32x32xf32>
    %c2 = arith.constant 2 : index
    %c0_13 = arith.constant 0 : index
    %c0_14 = arith.constant 0 : index
    %16 = vector.load %arg4[%c2, %c0_13, %c0_14] : memref<4x32x32xf32, #tpu.memory_space<vmem>>, vector<1x32x32xf32>
    %17 = vector.shape_cast %16 : vector<1x32x32xf32> to vector<32x32xf32>
    %18 = vector.shape_cast %15 : vector<32x32xf32> to vector<1x32x32xf32>
    tpu.vector_store %arg4[%c2, %c0_13, %c0_14], %18 {strides = array<i32>} : memref<4x32x32xf32, #tpu.memory_space<vmem>>, vector<1x32x32xf32>,
    %19 = vector.extract_strided_slice %3 {offsets = [48, 0], sizes = [16, 32], strides = [1, 1]} : vector<64x32xf32> to vector<16x32xf32>
    %cst_15 = arith.constant dense<0.000000e+00> : vector<32x32xf32>
    %20 = tpu.matmul %0, %19, %cst_15 {dimension_numbers = #tpu.dot_dimension_numbers<[1], [0], [0], [1], [0, 0, 1, 1], [], []>} : vector<32x16xf32>, vector<16x32xf32>, vector<32x32xf32> -> vector<32x32xf32>
    %c3 = arith.constant 3 : index
    %c0_16 = arith.constant 0 : index
    %c0_17 = arith.constant 0 : index
    %21 = vector.load %arg4[%c3, %c0_16, %c0_17] : memref<4x32x32xf32, #tpu.memory_space<vmem>>, vector<1x32x32xf32>
    %22 = vector.shape_cast %21 : vector<1x32x32xf32> to vector<32x32xf32>
    %23 = vector.shape_cast %20 : vector<32x32xf32> to vector<1x32x32xf32>
    tpu.vector_store %arg4[%c3, %c0_16, %c0_17], %23 {strides = array<i32>} : memref<4x32x32xf32, #tpu.memory_space<vmem>>, vector<1x32x32xf32>,
    return
  }
  func.func @transform_0(%arg0: i32) -> (i32, i32) {
    %c0_i32 = arith.constant 0 : i32
    %c0_i32_0 = arith.constant 0 : i32
    %c0_i32_1 = arith.constant 0 : i32
    return %c0_i32, %c0_i32_0 : i32, i32
  }
  func.func @transform_1(%arg0: i32) -> (i32, i32) {
    %c0_i32 = arith.constant 0 : i32
    %c0_i32_0 = arith.constant 0 : i32
    %c0_i32_1 = arith.constant 0 : i32
    return %c0_i32, %c0_i32_0 : i32, i32
  }
  func.func @transform_2(%arg0: i32) -> (i32, i32) {
    %c0_i32 = arith.constant 0 : i32
    %c0_i32_0 = arith.constant 0 : i32
    return %arg0, %c0_i32 : i32, i32
  }
  func.func @transform_3(%arg0: i32) -> (i32, i32, i32) {
    %c0_i32 = arith.constant 0 : i32
    %c0_i32_0 = arith.constant 0 : i32
    %c0_i32_1 = arith.constant 0 : i32
    return %arg0, %c0_i32, %c0_i32_0 : i32, i32, i32
  }
}

</mosaic_0001>

<llo_original>
// kernel: tpu_custom_call.1
$region0: #{tpu_custom_call.1}
  #allocation0 [shape = 'u32[]', space=smem, size = 0x4, offset = 0x4, fixed_abs, tag = 'smem constant byte address 0x4 - core index']
  #allocation1 [shape = 'u32[144,128]{1,0:T(1,128)}', space=vmem, size = 0x12000, scoped, tag = 'internal scratch']
  %s0 = inlined_call_operand.hbm [shape: f32[32,16], index: 0, kind: input, shape index: {}]
  %s1 = inlined_call_operand.hbm [shape: f32[16,32], index: 1, kind: input, shape index: {}]
  %s2 = inlined_call_operand.hbm [shape: f32[128,16], index: 2, kind: input, shape index: {}]
  %s3 = inlined_call_operand.hbm [shape: f32[8,32,32], index: 3, kind: output, shape index: {}]
  %s4 = sld [smem:[#allocation0]]
  $region57: #{tpu_custom_call.1} parent=0
    _
  %s6 = ssub.s32 1, %s4
  %s7 = scalar_select 0, %s6, %s4
  $region1: #{tpu_custom_call.1} parent=0
    #allocation2 [shape = 'u8[16384]{0}', space=vmem, size = 0x4000, scoped, tag = 'input window, operand 0, single buffered']
    #allocation3 [shape = 's32[2]{0}', space=sflag, size = 0x8, scoped, tag = 'scoped memory for tpu_custom_call.1']
    #allocation4 [shape = 's32[2]{0}', space=sflag, size = 0x8, scoped, tag = 'scoped memory for tpu_custom_call.1']
    #allocation5 [shape = 'u8[8192]{0}', space=vmem, size = 0x2000, scoped, tag = 'input window, operand 1, single buffered']
    #allocation6 [shape = 's32[1]{0}', space=sflag, size = 0x4, scoped, tag = 'scoped memory for tpu_custom_call.1']
    #allocation7 [shape = 'u8[65536]{0}', space=vmem, size = 0x10000, scoped, tag = 'input window, operand 2']
    #allocation8 [shape = 'u8[131072]{0}', space=vmem, size = 0x20000, scoped, tag = 'output window, operand 0']
    %8 = vsyncpa [#allocation3], 0
    %9 = vsyncpa [#allocation6], 0
    %10 = vsyncpa [#allocation4], 0
    %s11 = scalar_lea.sflag [#allocation4], 1
    %12 = vsyncpa %s11, 0
    loop: start=0, step=1, limit=4
    $region2: #{tpu_custom_call.1} parent=1 // loop_pre_header
      _
    $region3: #{tpu_custom_call.1} parent=1 // loop_header
      %s14 = sphi 0, %s18
      %p15 = scmp.ge.s32.totalorder %s14, 4
      %s22 = sphi 0, %s22
      %s24 = sphi 0, %s22
      %s25 = sphi 0, %s24
      %s39 = sphi 0, %s25
      %s43 = sphi 0, %s43
      %s45 = sphi 0, %s43
      %s46 = sphi 0, %s45
      %s60 = sphi 0, %s46
      %s66 = sphi 0, %s68
      %s69 = sphi 0, %s66
      %s70 = sphi 0, %s69
      %s86 = sphi 0, %s70
      %s92 = sphi 0, %s94
      %s95 = sphi 0, %s92
      %s96 = sphi 0, %s95
      %s112 = sphi 0, %s96
    $region4: #{tpu_custom_call.1} parent=1 // loop_header_branch
      %17 = sbr.rel (%p15) target = $region8
    $region5: #{tpu_custom_call.1} parent=1 // loop_body
      %s19 = ssub.s32 %s14, 1
      %s20 = ssub.s32 %s14, 2
      %s21 = sadd.s32 %s14, 1
      %s23 = sadd.s32 %s22, 1
      %p26 = scmp.eq.s32.totalorder %s14, 1
      %p27 = scmp.ne.s32.totalorder %s22, %s24
      %p28 = scmp.eq.s32.totalorder %s14, 0
      %p29 = por %p27, %p28
      %p30 = scmp.ne.s32.totalorder %s22, %s24
      %p31 = scmp.eq.s32.totalorder %s19, 1
      %p32 = por %p30, %p31
      %p33 = scmp.ne.s32.totalorder %s24, %s25
      %p34 = scmp.eq.s32.totalorder %s19, 0
      %p35 = por %p33, %p34
      %p36 = scmp.ne.s32.totalorder %s24, %s25
      %p37 = scmp.eq.s32.totalorder %s20, 1
      %p38 = por %p36, %p37
      %p40 = scmp.ne.s32.totalorder %s25, %s39
      %p41 = scmp.eq.s32.totalorder %s20, 0
      %p42 = por %p40, %p41
      %s44 = sadd.s32 %s43, 1
      %p47 = scmp.eq.s32.totalorder %s14, 1
      %p48 = scmp.ne.s32.totalorder %s43, %s45
      %p49 = scmp.eq.s32.totalorder %s14, 0
      %p50 = por %p48, %p49
      %p51 = scmp.ne.s32.totalorder %s43, %s45
      %p52 = scmp.eq.s32.totalorder %s19, 1
      %p53 = por %p51, %p52
      %p54 = scmp.ne.s32.totalorder %s45, %s46
      %p55 = scmp.eq.s32.totalorder %s19, 0
      %p56 = por %p54, %p55
      %p57 = scmp.ne.s32.totalorder %s45, %s46
      %p58 = scmp.eq.s32.totalorder %s20, 1
      %p59 = por %p57, %p58
      %p61 = scmp.ne.s32.totalorder %s46, %s60
      %p62 = scmp.eq.s32.totalorder %s20, 0
      %p63 = por %p61, %p62
      %s64 = ssub.s32 %s14, %s21
      %p65 = scmp.eq.s32.totalorder %s64, 0
      %s67 = sadd.s32 %s66, 1
      %s68 = scalar_select %p65, %s66, %s67
      %p71 = pneg %p65
      %p72 = scmp.eq.s32.totalorder %s14, 1
      %p73 = por %p71, %p72
      %p74 = scmp.ne.s32.totalorder %s66, %s69
      %p75 = scmp.eq.s32.totalorder %s14, 0
      %p76 = por %p74, %p75
      %p77 = scmp.ne.s32.totalorder %s66, %s69
      %p78 = scmp.eq.s32.totalorder %s19, 1
      %p79 = por %p77, %p78
      %p80 = scmp.ne.s32.totalorder %s69, %s70
      %p81 = scmp.eq.s32.totalorder %s19, 0
      %p82 = por %p80, %p81
      %p83 = scmp.ne.s32.totalorder %s69, %s70
      %p84 = scmp.eq.s32.totalorder %s20, 1
      %p85 = por %p83, %p84
      %p87 = scmp.ne.s32.totalorder %s70, %s86
      %p88 = scmp.eq.s32.totalorder %s20, 0
      %p89 = por %p87, %p88
      %s90 = ssub.s32 %s14, %s21
      %p91 = scmp.eq.s32.totalorder %s90, 0
      %s93 = sadd.s32 %s92, 1
      %s94 = scalar_select %p91, %s92, %s93
      %p97 = pneg %p91
      %p98 = scmp.eq.s32.totalorder %s14, 1
      %p99 = por %p97, %p98
      %p100 = scmp.ne.s32.totalorder %s92, %s95
      %p101 = scmp.eq.s32.totalorder %s14, 0
      %p102 = por %p100, %p101
      %p103 = scmp.ne.s32.totalorder %s92, %s95
      %p104 = scmp.eq.s32.totalorder %s19, 1
      %p105 = por %p103, %p104
      %p106 = scmp.ne.s32.totalorder %s95, %s96
      %p107 = scmp.eq.s32.totalorder %s19, 0
      %p108 = por %p106, %p107
      %p109 = scmp.ne.s32.totalorder %s95, %s96
      %p110 = scmp.eq.s32.totalorder %s20, 1
      %p111 = por %p109, %p110
      %p113 = scmp.ne.s32.totalorder %s96, %s112
      %p114 = scmp.eq.s32.totalorder %s20, 0
      %p115 = por %p113, %p114
      %p116 = scmp.le.s32.totalorder 1, %s14
      %p117 = scmp.lt.s32.totalorder %s14, 3
      %p118 = pnand %p116, %p117
      %p119 = pneg %p118
      // Predicated region
      $region9: #{tpu_custom_call.1} parent=5 // pred_check
        _
      $region10: #{tpu_custom_call.1} parent=5 // pred_check_branch
        %121 = sbr.rel (%p118) target = $region12
      $region11: #{tpu_custom_call.1} parent=5 // pred_region
        %s122 = ssub.s32 %s14, 1
        // Predicated region
        $region13: #{tpu_custom_call.1} parent=11 // pred_check
          %p123 = pneg %p35
        $region14: #{tpu_custom_call.1} parent=11 // pred_check_branch
          %125 = sbr.rel (%p123) target = $region16
        $region15: #{tpu_custom_call.1} parent=11 // pred_region
          %s127 = ssub.s32 512, 512
          %128 = vsyncadd [#allocation3], %s127
          %s129 = sshll.u32 [#allocation2], 4
          %s130 = int_to_ptr.vmem [resolvable:$true] %s129
          %135 = dma.hbm_to_vmem [thread:$0]  %s0, 512, %s130, [#allocation3], 128, 128, 8
        $region16: #{tpu_custom_call.1} parent=11 // pred_fallthru
          _
        // Predicated region
        $region17: #{tpu_custom_call.1} parent=11 // pred_check
          %p136 = pneg %p56
        $region18: #{tpu_custom_call.1} parent=11 // pred_check_branch
          %138 = sbr.rel (%p136) target = $region20
        $region19: #{tpu_custom_call.1} parent=11 // pred_region
          %s140 = ssub.s32 256, 256
          %141 = vsyncadd [#allocation6], %s140
          %s142 = sshll.u32 [#allocation5], 4
          %s143 = int_to_ptr.vmem [resolvable:$true] %s142
          %148 = dma.hbm_to_vmem [thread:$0]  %s1, 256, %s143, [#allocation6], 128, 128, 8
        $region20: #{tpu_custom_call.1} parent=11 // pred_fallthru
          _
      $region12: #{tpu_custom_call.1} parent=5 // pred_fallthru
        _
      %p149 = scmp.lt.s32.totalorder %s14, 2
      // Predicated region
      $region21: #{tpu_custom_call.1} parent=5 // pred_check
        %p150 = pneg %p149
      $region22: #{tpu_custom_call.1} parent=5 // pred_check_branch
        %152 = sbr.rel (%p150) target = $region24
      $region23: #{tpu_custom_call.1} parent=5 // pred_region
        // Predicated region
        $region25: #{tpu_custom_call.1} parent=23 // pred_check
          %p153 = pneg %p76
        $region26: #{tpu_custom_call.1} parent=23 // pred_check_branch
          %155 = sbr.rel (%p153) target = $region28
        $region27: #{tpu_custom_call.1} parent=23 // pred_region
          %s156 = sand.u32 %s14, 1
          %s157 = scalar_lea.sflag [#allocation3], %s156
          %s158 = sand.u32 %s66, 1
          %s159 = smul.addr %s158, 64
          %s160 = scalar_lea.vmem [#allocation7], %s159
          %s161 = smul.u32 8, %s14
          %s163 = ssub.s32 1024, 1024
          %164 = vsyncadd %s157, %s163
          %s165 = smul.addr %s161, 128
          %s166 = scalar_lea.hbm %s2, %s165
          %s167 = sshll.u32 %s160, 4
          %s168 = int_to_ptr.vmem [resolvable:$true] %s167
          %173 = dma.hbm_to_vmem [thread:$0]  %s166, 1024, %s168, %s157, 128, 128, 8
        $region28: #{tpu_custom_call.1} parent=23 // pred_fallthru
          _
      $region24: #{tpu_custom_call.1} parent=5 // pred_fallthru
        _
      %p174 = scmp.le.s32.totalorder 1, %s14
      %p175 = scmp.lt.s32.totalorder %s14, 3
      %p176 = pnand %p174, %p175
      %p177 = pneg %p176
      // Predicated region
      $region29: #{tpu_custom_call.1} parent=5 // pred_check
        _
      $region30: #{tpu_custom_call.1} parent=5 // pred_check_branch
        %179 = sbr.rel (%p176) target = $region32
      $region31: #{tpu_custom_call.1} parent=5 // pred_region
        %s180 = ssub.s32 %s14, 1
        // Predicated region
        $region33: #{tpu_custom_call.1} parent=31 // pred_check
          %p181 = pneg %p35
        $region34: #{tpu_custom_call.1} parent=31 // pred_check_branch
          %183 = sbr.rel (%p181) target = $region36
        $region35: #{tpu_custom_call.1} parent=31 // pred_region
          %184 = dma.done [#allocation3], 512
        $region36: #{tpu_custom_call.1} parent=31 // pred_fallthru
          _
        // Predicated region
        $region37: #{tpu_custom_call.1} parent=31 // pred_check
          %p185 = pneg %p56
        $region38: #{tpu_custom_call.1} parent=31 // pred_check_branch
          %187 = sbr.rel (%p185) target = $region40
        $region39: #{tpu_custom_call.1} parent=31 // pred_region
          %188 = dma.done [#allocation6], 256
        $region40: #{tpu_custom_call.1} parent=31 // pred_fallthru
          _
        %s189 = sand.u32 %s19, 1
        %s190 = scalar_lea.sflag [#allocation3], %s189
        %s191 = sand.u32 %s69, 1
        %s192 = smul.addr %s191, 64
        %s193 = scalar_lea.vmem [#allocation7], %s192
        // Predicated region
        $region41: #{tpu_custom_call.1} parent=31 // pred_check
          %p194 = pneg %p82
        $region42: #{tpu_custom_call.1} parent=31 // pred_check_branch
          %196 = sbr.rel (%p194) target = $region44
        $region43: #{tpu_custom_call.1} parent=31 // pred_region
          %197 = dma.done %s190, 1024
        $region44: #{tpu_custom_call.1} parent=31 // pred_fallthru
          _
        %p198 = pneg %p35
        %p199 = pneg %p32
        %p200 = pneg %p56
        %p201 = pneg %p53
        %s202 = sand.u32 %s19, 1
        %s203 = scalar_lea.sflag [#allocation3], %s202
        %s204 = sand.u32 %s69, 1
        %s205 = smul.addr %s204, 64
        %s206 = scalar_lea.vmem [#allocation7], %s205
        %p207 = pneg %p82
        %p208 = pneg %p79
        %p209 = pneg %p108
        %p210 = pneg %p105
        %s211 = sand.u32 %s95, 1
        %s212 = scalar_lea.sflag [#allocation4], %s211
        %s213 = sand.u32 %s95, 1
        %s214 = smul.addr %s213, 128
        %s215 = scalar_lea.vmem [#allocation8], %s214
        %s216 = smul.u32 8, %s19
        %s217 = smul.u32 4, %s19
        %v218 = vld [vmem:[#allocation2] sm:$0xff]
        %v219 = vld [vmem:[#allocation2 + $0x8] sm:$0xff]
        %v220 = vld [vmem:[#allocation2 + $0x10] sm:$0xff]
        %v221 = vld [vmem:[#allocation2 + $0x18] sm:$0xff]
        %v222 = vld [vmem:[#allocation5] sm:$0xff]
        %v223 = vld [vmem:[#allocation5 + $0x8] sm:$0xff]
        %v224 = vld [vmem:[%s193] sm:$0xff]
        %v225 = vld [vmem:[%s193 + $0x8] sm:$0xff]
        %v226 = vld [vmem:[%s193 + $0x10] sm:$0xff]
        %v227 = vld [vmem:[%s193 + $0x18] sm:$0xff]
        %v228 = vld [vmem:[%s193 + $0x20] sm:$0xff]
        %v229 = vld [vmem:[%s193 + $0x28] sm:$0xff]
        %v230 = vld [vmem:[%s193 + $0x30] sm:$0xff]
        %v231 = vld [vmem:[%s193 + $0x38] sm:$0xff]
        %vm232 = vcmask 130048
        %v234 = vsel %vm232, %v224, 0
        %v237 = vsel %vm232, %v225, 0
        %v240 = vsel %vm232, %v226, 0
        %v243 = vsel %vm232, %v227, 0
        %v246 = vsel %vm232, %v228, 0
        %v249 = vsel %vm232, %v229, 0
        %v252 = vsel %vm232, %v230, 0
        %v255 = vsel %vm232, %v231, 0
        %257 = vmatprep.subr.mxu0 0.0
        %258 = vmatpush1.msra.mxu0 %v222
        %259 = vmatprep.subr.mxu0 0.0
        %260 = vmatpush1.msra.mxu0 %v223
        %261 = vmatprep.subr.mxu0 0.0
        %262 = vmatpush1.msra.mxu0 0.0
        %263 = vmatprep.subr.mxu0 0.0
        %264 = vmatpush1.msra.mxu0 0.0
        %265 = vmatprep.subr.mxu0 0.0
        %266 = vmatpush1.msra.mxu0 0.0
        %267 = vmatprep.subr.mxu0 0.0
        %268 = vmatpush1.msra.mxu0 0.0
        %269 = vmatprep.subr.mxu0 0.0
        %270 = vmatpush1.msra.mxu0 0.0
        %271 = vmatprep.subr.mxu0 0.0
        %272 = vmatpush1.msra.mxu0 0.0
        %273 = vmatprep.subr.mxu0 0.0
        %274 = vmatpush1.msra.mxu0 0.0
        %275 = vmatprep.subr.mxu0 0.0
        %276 = vmatpush1.msra.mxu0 0.0
        %277 = vmatprep.subr.mxu0 0.0
        %278 = vmatpush1.msra.mxu0 0.0
        %279 = vmatprep.subr.mxu0 0.0
        %280 = vmatpush1.msra.mxu0 0.0
        %281 = vmatprep.subr.mxu0 0.0
        %282 = vmatpush1.msra.mxu0 0.0
        %283 = vmatprep.subr.mxu0 0.0
        %284 = vmatpush1.msra.mxu0 0.0
        %285 = vmatprep.subr.mxu0 0.0
        %286 = vmatpush1.msra.mxu0 0.0
        %287 = vmatprep.subr.mxu0 0.0
        %288 = vmatpush1.msra.mxu0 0.0
        %289 = vmatprep.subr.mxu0 0.0
        %290 = vmatpush1.msra.mxu0 0.0
        %291 = vmatprep.subr.mxu0 0.0
        %292 = vmatpush1.msra.mxu0 0.0
        %293 = vmatprep.subr.mxu0 0.0
        %294 = vmatpush1.msra.mxu0 0.0
        %295 = vmatprep.subr.mxu0 0.0
        %296 = vmatpush1.msra.mxu0 0.0
        %297 = vmatprep.subr.mxu0 0.0
        %298 = vmatpush1.msra.mxu0 0.0
        %299 = vmatprep.subr.mxu0 0.0
        %300 = vmatpush1.msra.mxu0 0.0
        %301 = vmatprep.subr.mxu0 0.0
        %302 = vmatpush1.msra.mxu0 0.0
        %303 = vmatprep.subr.mxu0 0.0
        %304 = vmatpush1.msra.mxu0 0.0
        %305 = vmatprep.subr.mxu0 0.0
        %306 = vmatpush1.msra.mxu0 0.0
        %307 = vmatprep.subr.mxu0 0.0
        %308 = vmatpush1.msra.mxu0 0.0
        %309 = vmatprep.subr.mxu0 0.0
        %310 = vmatpush1.msra.mxu0 0.0
        %311 = vmatprep.subr.mxu0 0.0
        %312 = vmatpush1.msra.mxu0 0.0
        %313 = vmatprep.subr.mxu0 0.0
        %314 = vmatpush1.msra.mxu0 0.0
        %315 = vmatprep.subr.mxu0 0.0
        %316 = vmatpush1.msra.mxu0 0.0
        %317 = vmatprep.subr.mxu0 0.0
        %318 = vmatpush1.msra.mxu0 0.0
        %319 = vmatprep.subr.mxu0 0.0
        %320 = vmatpush1.msra.mxu0 0.0
        %321 = vmatprep.mubr.f32.mxu0 0.0
        %322 = vmatmul.mubr.f32.gmra.mrb[0].mxu0 %v234
        %v323 = vpop.f32.mrb[0].mxu0
        %v324 = vadd.f32 0.0, %v323
        %v325 = vpop.f32.mrb[0].mxu0
        %326 = vmatprep.mubr.f32.mxu0 0.0
        %327 = vmatmul.mubr.f32.gmra.mrb[0].mxu0 %v237
        %v328 = vpop.f32.mrb[0].mxu0
        %v329 = vadd.f32 0.0, %v328
        %v330 = vpop.f32.mrb[0].mxu0
        %331 = vmatprep.mubr.f32.mxu0 0.0
        %332 = vmatmul.mubr.f32.gmra.mrb[0].mxu0 %v240
        %v333 = vpop.f32.mrb[0].mxu0
        %v334 = vadd.f32 0.0, %v333
        %v335 = vpop.f32.mrb[0].mxu0
        %336 = vmatprep.mubr.f32.mxu0 0.0
        %337 = vmatmul.mubr.f32.gmra.mrb[0].mxu0 %v243
        %v338 = vpop.f32.mrb[0].mxu0
        %v339 = vadd.f32 0.0, %v338
        %v340 = vpop.f32.mrb[0].mxu0
        %341 = vmatprep.mubr.f32.mxu0 0.0
        %342 = vmatmul.mubr.f32.gmra.mrb[0].mxu0 %v246
        %v343 = vpop.f32.mrb[0].mxu0
        %v344 = vadd.f32 0.0, %v343
        %v345 = vpop.f32.mrb[0].mxu0
        %346 = vmatprep.mubr.f32.mxu0 0.0
        %347 = vmatmul.mubr.f32.gmra.mrb[0].mxu0 %v249
        %v348 = vpop.f32.mrb[0].mxu0
        %v349 = vadd.f32 0.0, %v348
        %v350 = vpop.f32.mrb[0].mxu0
        %351 = vmatprep.mubr.f32.mxu0 0.0
        %352 = vmatmul.mubr.f32.gmra.mrb[0].mxu0 %v252
        %v353 = vpop.f32.mrb[0].mxu0
        %v354 = vadd.f32 0.0, %v353
        %v355 = vpop.f32.mrb[0].mxu0
        %356 = vmatprep.mubr.f32.mxu0 0.0
        %357 = vmatmul.mubr.f32.gmra.mrb[0].mxu0 %v255
        %v358 = vpop.f32.mrb[0].mxu0
        %v359 = vadd.f32 0.0, %v358
        %v360 = vpop.f32.mrb[0].mxu0
        %361 = vdwg.mxu0
        %v363 = vsel %vm232, %v218, 0
        %v366 = vsel %vm232, %v219, 0
        %v369 = vsel %vm232, %v220, 0
        %v372 = vsel %vm232, %v221, 0
        %374 = vmatprep.subr.mxu0 0.0
        %375 = vmatpush1.msra.mxu0 %v324
        %376 = vmatprep.subr.mxu0 0.0
        %377 = vmatpush1.msra.mxu0 %v329
        %378 = vmatprep.subr.mxu0 0.0
        %379 = vmatpush1.msra.mxu0 0.0
        %380 = vmatprep.subr.mxu0 0.0
        %381 = vmatpush1.msra.mxu0 0.0
        %382 = vmatprep.subr.mxu0 0.0
        %383 = vmatpush1.msra.mxu0 0.0
        %384 = vmatprep.subr.mxu0 0.0
        %385 = vmatpush1.msra.mxu0 0.0
        %386 = vmatprep.subr.mxu0 0.0
        %387 = vmatpush1.msra.mxu0 0.0
        %388 = vmatprep.subr.mxu0 0.0
        %389 = vmatpush1.msra.mxu0 0.0
        %390 = vmatprep.subr.mxu0 0.0
        %391 = vmatpush1.msra.mxu0 0.0
        %392 = vmatprep.subr.mxu0 0.0
        %393 = vmatpush1.msra.mxu0 0.0
        %394 = vmatprep.subr.mxu0 0.0
        %395 = vmatpush1.msra.mxu0 0.0
        %396 = vmatprep.subr.mxu0 0.0
        %397 = vmatpush1.msra.mxu0 0.0
        %398 = vmatprep.subr.mxu0 0.0
        %399 = vmatpush1.msra.mxu0 0.0
        %400 = vmatprep.subr.mxu0 0.0
        %401 = vmatpush1.msra.mxu0 0.0
        %402 = vmatprep.subr.mxu0 0.0
        %403 = vmatpush1.msra.mxu0 0.0
        %404 = vmatprep.subr.mxu0 0.0
        %405 = vmatpush1.msra.mxu0 0.0
        %406 = vmatprep.subr.mxu0 0.0
        %407 = vmatpush1.msra.mxu0 0.0
        %408 = vmatprep.subr.mxu0 0.0
        %409 = vmatpush1.msra.mxu0 0.0
        %410 = vmatprep.subr.mxu0 0.0
        %411 = vmatpush1.msra.mxu0 0.0
        %412 = vmatprep.subr.mxu0 0.0
        %413 = vmatpush1.msra.mxu0 0.0
        %414 = vmatprep.subr.mxu0 0.0
        %415 = vmatpush1.msra.mxu0 0.0
        %416 = vmatprep.subr.mxu0 0.0
        %417 = vmatpush1.msra.mxu0 0.0
        %418 = vmatprep.subr.mxu0 0.0
        %419 = vmatpush1.msra.mxu0 0.0
        %420 = vmatprep.subr.mxu0 0.0
        %421 = vmatpush1.msra.mxu0 0.0
        %422 = vmatprep.subr.mxu0 0.0
        %423 = vmatpush1.msra.mxu0 0.0
        %424 = vmatprep.subr.mxu0 0.0
        %425 = vmatpush1.msra.mxu0 0.0
        %426 = vmatprep.subr.mxu0 0.0
        %427 = vmatpush1.msra.mxu0 0.0
        %428 = vmatprep.subr.mxu0 0.0
        %429 = vmatpush1.msra.mxu0 0.0
        %430 = vmatprep.subr.mxu0 0.0
        %431 = vmatpush1.msra.mxu0 0.0
        %432 = vmatprep.subr.mxu0 0.0
        %433 = vmatpush1.msra.mxu0 0.0
        %434 = vmatprep.subr.mxu0 0.0
        %435 = vmatpush1.msra.mxu0 0.0
        %436 = vmatprep.subr.mxu0 0.0
        %437 = vmatpush1.msra.mxu0 0.0
        %438 = vmatprep.mubr.f32.mxu0 0.0
        %439 = vmatmul.mubr.f32.gmra.mrb[0].mxu0 %v363
        %v440 = vpop.f32.mrb[0].mxu0
        %v441 = vadd.f32 0.0, %v440
        %v442 = vpop.f32.mrb[0].mxu0
        %443 = vmatprep.mubr.f32.mxu0 0.0
        %444 = vmatmul.mubr.f32.gmra.mrb[0].mxu0 %v366
        %v445 = vpop.f32.mrb[0].mxu0
        %v446 = vadd.f32 0.0, %v445
        %v447 = vpop.f32.mrb[0].mxu0
        %448 = vmatprep.mubr.f32.mxu0 0.0
        %449 = vmatmul.mubr.f32.gmra.mrb[0].mxu0 %v369
        %v450 = vpop.f32.mrb[0].mxu0
        %v451 = vadd.f32 0.0, %v450
        %v452 = vpop.f32.mrb[0].mxu0
        %453 = vmatprep.mubr.f32.mxu0 0.0
        %454 = vmatmul.mubr.f32.gmra.mrb[0].mxu0 %v372
        %v455 = vpop.f32.mrb[0].mxu0
        %v456 = vadd.f32 0.0, %v455
        %v457 = vpop.f32.mrb[0].mxu0
        %458 = vdwg.mxu0
        %vm459 = vcmask 261120
        %460 = vst.msk [vmem:[%s215] sm:$0xff] %vm459, %v441
        %461 = vst.msk [vmem:[%s215 + $0x8] sm:$0xff] %vm459, %v446
        %462 = vst.msk [vmem:[%s215 + $0x10] sm:$0xff] %vm459, %v451
        %463 = vst.msk [vmem:[%s215 + $0x18] sm:$0xff] %vm459, %v456
        %464 = vmatprep.subr.mxu0 0.0
        %465 = vmatpush1.msra.mxu0 %v334
        %466 = vmatprep.subr.mxu0 0.0
        %467 = vmatpush1.msra.mxu0 %v339
        %468 = vmatprep.subr.mxu0 0.0
        %469 = vmatpush1.msra.mxu0 0.0
        %470 = vmatprep.subr.mxu0 0.0
        %471 = vmatpush1.msra.mxu0 0.0
        %472 = vmatprep.subr.mxu0 0.0
        %473 = vmatpush1.msra.mxu0 0.0
        %474 = vmatprep.subr.mxu0 0.0
        %475 = vmatpush1.msra.mxu0 0.0
        %476 = vmatprep.subr.mxu0 0.0
        %477 = vmatpush1.msra.mxu0 0.0
        %478 = vmatprep.subr.mxu0 0.0
        %479 = vmatpush1.msra.mxu0 0.0
        %480 = vmatprep.subr.mxu0 0.0
        %481 = vmatpush1.msra.mxu0 0.0
        %482 = vmatprep.subr.mxu0 0.0
        %483 = vmatpush1.msra.mxu0 0.0
        %484 = vmatprep.subr.mxu0 0.0
        %485 = vmatpush1.msra.mxu0 0.0
        %486 = vmatprep.subr.mxu0 0.0
        %487 = vmatpush1.msra.mxu0 0.0
        %488 = vmatprep.subr.mxu0 0.0
        %489 = vmatpush1.msra.mxu0 0.0
        %490 = vmatprep.subr.mxu0 0.0
        %491 = vmatpush1.msra.mxu0 0.0
        %492 = vmatprep.subr.mxu0 0.0
        %493 = vmatpush1.msra.mxu0 0.0
        %494 = vmatprep.subr.mxu0 0.0
        %495 = vmatpush1.msra.mxu0 0.0
        %496 = vmatprep.subr.mxu0 0.0
        %497 = vmatpush1.msra.mxu0 0.0
        %498 = vmatprep.subr.mxu0 0.0
        %499 = vmatpush1.msra.mxu0 0.0
        %500 = vmatprep.subr.mxu0 0.0
        %501 = vmatpush1.msra.mxu0 0.0
        %502 = vmatprep.subr.mxu0 0.0
        %503 = vmatpush1.msra.mxu0 0.0
        %504 = vmatprep.subr.mxu0 0.0
        %505 = vmatpush1.msra.mxu0 0.0
        %506 = vmatprep.subr.mxu0 0.0
        %507 = vmatpush1.msra.mxu0 0.0
        %508 = vmatprep.subr.mxu0 0.0
        %509 = vmatpush1.msra.mxu0 0.0
        %510 = vmatprep.subr.mxu0 0.0
        %511 = vmatpush1.msra.mxu0 0.0
        %512 = vmatprep.subr.mxu0 0.0
        %513 = vmatpush1.msra.mxu0 0.0
        %514 = vmatprep.subr.mxu0 0.0
        %515 = vmatpush1.msra.mxu0 0.0
        %516 = vmatprep.subr.mxu0 0.0
        %517 = vmatpush1.msra.mxu0 0.0
        %518 = vmatprep.subr.mxu0 0.0
        %519 = vmatpush1.msra.mxu0 0.0
        %520 = vmatprep.subr.mxu0 0.0
        %521 = vmatpush1.msra.mxu0 0.0
        %522 = vmatprep.subr.mxu0 0.0
        %523 = vmatpush1.msra.mxu0 0.0
        %524 = vmatprep.subr.mxu0 0.0
        %525 = vmatpush1.msra.mxu0 0.0
        %526 = vmatprep.subr.mxu0 0.0
        %527 = vmatpush1.msra.mxu0 0.0
        %528 = vmatprep.mubr.f32.mxu0 0.0
        %529 = vmatmul.mubr.f32.gmra.mrb[0].mxu0 %v363
        %v530 = vpop.f32.mrb[0].mxu0
        %v531 = vadd.f32 0.0, %v530
        %v532 = vpop.f32.mrb[0].mxu0
        %533 = vmatprep.mubr.f32.mxu0 0.0
        %534 = vmatmul.mubr.f32.gmra.mrb[0].mxu0 %v366
        %v535 = vpop.f32.mrb[0].mxu0
        %v536 = vadd.f32 0.0, %v535
        %v537 = vpop.f32.mrb[0].mxu0
        %538 = vmatprep.mubr.f32.mxu0 0.0
        %539 = vmatmul.mubr.f32.gmra.mrb[0].mxu0 %v369
        %v540 = vpop.f32.mrb[0].mxu0
        %v541 = vadd.f32 0.0, %v540
        %v542 = vpop.f32.mrb[0].mxu0
        %543 = vmatprep.mubr.f32.mxu0 0.0
        %544 = vmatmul.mubr.f32.gmra.mrb[0].mxu0 %v372
        %v545 = vpop.f32.mrb[0].mxu0
        %v546 = vadd.f32 0.0, %v545
        %v547 = vpop.f32.mrb[0].mxu0
        %548 = vdwg.mxu0
        %s549 = scalar_lea.vmem %s215, 32 [#allocation8]
        %550 = vst.msk [vmem:[%s549] sm:$0xff] %vm459, %v531
        %551 = vst.msk [vmem:[%s549 + $0x8] sm:$0xff] %vm459, %v536
        %552 = vst.msk [vmem:[%s549 + $0x10] sm:$0xff] %vm459, %v541
        %553 = vst.msk [vmem:[%s549 + $0x18] sm:$0xff] %vm459, %v546
        %554 = vmatprep.subr.mxu0 0.0
        %555 = vmatpush1.msra.mxu0 %v344
        %556 = vmatprep.subr.mxu0 0.0
        %557 = vmatpush1.msra.mxu0 %v349
        %558 = vmatprep.subr.mxu0 0.0
        %559 = vmatpush1.msra.mxu0 0.0
        %560 = vmatprep.subr.mxu0 0.0
        %561 = vmatpush1.msra.mxu0 0.0
        %562 = vmatprep.subr.mxu0 0.0
        %563 = vmatpush1.msra.mxu0 0.0
        %564 = vmatprep.subr.mxu0 0.0
        %565 = vmatpush1.msra.mxu0 0.0
        %566 = vmatprep.subr.mxu0 0.0
        %567 = vmatpush1.msra.mxu0 0.0
        %568 = vmatprep.subr.mxu0 0.0
        %569 = vmatpush1.msra.mxu0 0.0
        %570 = vmatprep.subr.mxu0 0.0
        %571 = vmatpush1.msra.mxu0 0.0
        %572 = vmatprep.subr.mxu0 0.0
        %573 = vmatpush1.msra.mxu0 0.0
        %574 = vmatprep.subr.mxu0 0.0
        %575 = vmatpush1.msra.mxu0 0.0
        %576 = vmatprep.subr.mxu0 0.0
        %577 = vmatpush1.msra.mxu0 0.0
        %578 = vmatprep.subr.mxu0 0.0
        %579 = vmatpush1.msra.mxu0 0.0
        %580 = vmatprep.subr.mxu0 0.0
        %581 = vmatpush1.msra.mxu0 0.0
        %582 = vmatprep.subr.mxu0 0.0
        %583 = vmatpush1.msra.mxu0 0.0
        %584 = vmatprep.subr.mxu0 0.0
        %585 = vmatpush1.msra.mxu0 0.0
        %586 = vmatprep.subr.mxu0 0.0
        %587 = vmatpush1.msra.mxu0 0.0
        %588 = vmatprep.subr.mxu0 0.0
        %589 = vmatpush1.msra.mxu0 0.0
        %590 = vmatprep.subr.mxu0 0.0
        %591 = vmatpush1.msra.mxu0 0.0
        %592 = vmatprep.subr.mxu0 0.0
        %593 = vmatpush1.msra.mxu0 0.0
        %594 = vmatprep.subr.mxu0 0.0
        %595 = vmatpush1.msra.mxu0 0.0
        %596 = vmatprep.subr.mxu0 0.0
        %597 = vmatpush1.msra.mxu0 0.0
        %598 = vmatprep.subr.mxu0 0.0
        %599 = vmatpush1.msra.mxu0 0.0
        %600 = vmatprep.subr.mxu0 0.0
        %601 = vmatpush1.msra.mxu0 0.0
        %602 = vmatprep.subr.mxu0 0.0
        %603 = vmatpush1.msra.mxu0 0.0
        %604 = vmatprep.subr.mxu0 0.0
        %605 = vmatpush1.msra.mxu0 0.0
        %606 = vmatprep.subr.mxu0 0.0
        %607 = vmatpush1.msra.mxu0 0.0
        %608 = vmatprep.subr.mxu0 0.0
        %609 = vmatpush1.msra.mxu0 0.0
        %610 = vmatprep.subr.mxu0 0.0
        %611 = vmatpush1.msra.mxu0 0.0
        %612 = vmatprep.subr.mxu0 0.0
        %613 = vmatpush1.msra.mxu0 0.0
        %614 = vmatprep.subr.mxu0 0.0
        %615 = vmatpush1.msra.mxu0 0.0
        %616 = vmatprep.subr.mxu0 0.0
        %617 = vmatpush1.msra.mxu0 0.0
        %618 = vmatprep.mubr.f32.mxu0 0.0
        %619 = vmatmul.mubr.f32.gmra.mrb[0].mxu0 %v363
        %v620 = vpop.f32.mrb[0].mxu0
        %v621 = vadd.f32 0.0, %v620
        %v622 = vpop.f32.mrb[0].mxu0
        %623 = vmatprep.mubr.f32.mxu0 0.0
        %624 = vmatmul.mubr.f32.gmra.mrb[0].mxu0 %v366
        %v625 = vpop.f32.mrb[0].mxu0
        %v626 = vadd.f32 0.0, %v625
        %v627 = vpop.f32.mrb[0].mxu0
        %628 = vmatprep.mubr.f32.mxu0 0.0
        %629 = vmatmul.mubr.f32.gmra.mrb[0].mxu0 %v369
        %v630 = vpop.f32.mrb[0].mxu0
        %v631 = vadd.f32 0.0, %v630
        %v632 = vpop.f32.mrb[0].mxu0
        %633 = vmatprep.mubr.f32.mxu0 0.0
        %634 = vmatmul.mubr.f32.gmra.mrb[0].mxu0 %v372
        %v635 = vpop.f32.mrb[0].mxu0
        %v636 = vadd.f32 0.0, %v635
        %v637 = vpop.f32.mrb[0].mxu0
        %638 = vdwg.mxu0
        %s639 = scalar_lea.vmem %s215, 64 [#allocation8]
        %640 = vst.msk [vmem:[%s639] sm:$0xff] %vm459, %v621
        %641 = vst.msk [vmem:[%s639 + $0x8] sm:$0xff] %vm459, %v626
        %642 = vst.msk [vmem:[%s639 + $0x10] sm:$0xff] %vm459, %v631
        %643 = vst.msk [vmem:[%s639 + $0x18] sm:$0xff] %vm459, %v636
        %644 = vmatprep.subr.mxu0 0.0
        %645 = vmatpush1.msra.mxu0 %v354
        %646 = vmatprep.subr.mxu0 0.0
        %647 = vmatpush1.msra.mxu0 %v359
        %648 = vmatprep.subr.mxu0 0.0
        %649 = vmatpush1.msra.mxu0 0.0
        %650 = vmatprep.subr.mxu0 0.0
        %651 = vmatpush1.msra.mxu0 0.0
        %652 = vmatprep.subr.mxu0 0.0
        %653 = vmatpush1.msra.mxu0 0.0
        %654 = vmatprep.subr.mxu0 0.0
        %655 = vmatpush1.msra.mxu0 0.0
        %656 = vmatprep.subr.mxu0 0.0
        %657 = vmatpush1.msra.mxu0 0.0
        %658 = vmatprep.subr.mxu0 0.0
        %659 = vmatpush1.msra.mxu0 0.0
        %660 = vmatprep.subr.mxu0 0.0
        %661 = vmatpush1.msra.mxu0 0.0
        %662 = vmatprep.subr.mxu0 0.0
        %663 = vmatpush1.msra.mxu0 0.0
        %664 = vmatprep.subr.mxu0 0.0
        %665 = vmatpush1.msra.mxu0 0.0
        %666 = vmatprep.subr.mxu0 0.0
        %667 = vmatpush1.msra.mxu0 0.0
        %668 = vmatprep.subr.mxu0 0.0
        %669 = vmatpush1.msra.mxu0 0.0
        %670 = vmatprep.subr.mxu0 0.0
        %671 = vmatpush1.msra.mxu0 0.0
        %672 = vmatprep.subr.mxu0 0.0
        %673 = vmatpush1.msra.mxu0 0.0
        %674 = vmatprep.subr.mxu0 0.0
        %675 = vmatpush1.msra.mxu0 0.0
        %676 = vmatprep.subr.mxu0 0.0
        %677 = vmatpush1.msra.mxu0 0.0
        %678 = vmatprep.subr.mxu0 0.0
        %679 = vmatpush1.msra.mxu0 0.0
        %680 = vmatprep.subr.mxu0 0.0
        %681 = vmatpush1.msra.mxu0 0.0
        %682 = vmatprep.subr.mxu0 0.0
        %683 = vmatpush1.msra.mxu0 0.0
        %684 = vmatprep.subr.mxu0 0.0
        %685 = vmatpush1.msra.mxu0 0.0
        %686 = vmatprep.subr.mxu0 0.0
        %687 = vmatpush1.msra.mxu0 0.0
        %688 = vmatprep.subr.mxu0 0.0
        %689 = vmatpush1.msra.mxu0 0.0
        %690 = vmatprep.subr.mxu0 0.0
        %691 = vmatpush1.msra.mxu0 0.0
        %692 = vmatprep.subr.mxu0 0.0
        %693 = vmatpush1.msra.mxu0 0.0
        %694 = vmatprep.subr.mxu0 0.0
        %695 = vmatpush1.msra.mxu0 0.0
        %696 = vmatprep.subr.mxu0 0.0
        %697 = vmatpush1.msra.mxu0 0.0
        %698 = vmatprep.subr.mxu0 0.0
        %699 = vmatpush1.msra.mxu0 0.0
        %700 = vmatprep.subr.mxu0 0.0
        %701 = vmatpush1.msra.mxu0 0.0
        %702 = vmatprep.subr.mxu0 0.0
        %703 = vmatpush1.msra.mxu0 0.0
        %704 = vmatprep.subr.mxu0 0.0
        %705 = vmatpush1.msra.mxu0 0.0
        %706 = vmatprep.subr.mxu0 0.0
        %707 = vmatpush1.msra.mxu0 0.0
        %708 = vmatprep.mubr.f32.mxu0 0.0
        %709 = vmatmul.mubr.f32.gmra.mrb[0].mxu0 %v363
        %v710 = vpop.f32.mrb[0].mxu0
        %v711 = vadd.f32 0.0, %v710
        %v712 = vpop.f32.mrb[0].mxu0
        %713 = vmatprep.mubr.f32.mxu0 0.0
        %714 = vmatmul.mubr.f32.gmra.mrb[0].mxu0 %v366
        %v715 = vpop.f32.mrb[0].mxu0
        %v716 = vadd.f32 0.0, %v715
        %v717 = vpop.f32.mrb[0].mxu0
        %718 = vmatprep.mubr.f32.mxu0 0.0
        %719 = vmatmul.mubr.f32.gmra.mrb[0].mxu0 %v369
        %v720 = vpop.f32.mrb[0].mxu0
        %v721 = vadd.f32 0.0, %v720
        %v722 = vpop.f32.mrb[0].mxu0
        %723 = vmatprep.mubr.f32.mxu0 0.0
        %724 = vmatmul.mubr.f32.gmra.mrb[0].mxu0 %v372
        %v725 = vpop.f32.mrb[0].mxu0
        %v726 = vadd.f32 0.0, %v725
        %v727 = vpop.f32.mrb[0].mxu0
        %728 = vdwg.mxu0
        %s729 = scalar_lea.vmem %s215, 96 [#allocation8]
        %730 = vst.msk [vmem:[%s729] sm:$0xff] %vm459, %v711
        %731 = vst.msk [vmem:[%s729 + $0x8] sm:$0xff] %vm459, %v716
        %732 = vst.msk [vmem:[%s729 + $0x10] sm:$0xff] %vm459, %v721
        %733 = vst.msk [vmem:[%s729 + $0x18] sm:$0xff] %vm459, %v726
        %s734 = sand.u32 %s95, 1
        %s735 = scalar_lea.sflag [#allocation4], %s734
        %s736 = sand.u32 %s95, 1
        %s737 = smul.addr %s736, 128
        %s738 = scalar_lea.vmem [#allocation8], %s737
        // Predicated region
        $region45: #{tpu_custom_call.1} parent=31 // pred_check
          %p739 = pneg %p105
        $region46: #{tpu_custom_call.1} parent=31 // pred_check_branch
          %741 = sbr.rel (%p739) target = $region48
        $region47: #{tpu_custom_call.1} parent=31 // pred_region
          %s742 = smul.u32 4, %s19
          %s744 = ssub.s32 2048, 2048
          %745 = vsyncadd %s735, %s744
          %s746 = smul.addr %s742, 4
          %s747 = smul.addr %s746, 128
          %s748 = scalar_lea.hbm %s3, %s747
          %s749 = sshll.u32 %s738, 4
          %s750 = int_to_ptr.vmem [resolvable:$true] %s749
          %755 = dma.vmem_to_hbm [thread:$0]  %s750, 2048, %s748, %s735, 128, 128, 8
        $region48: #{tpu_custom_call.1} parent=31 // pred_fallthru
          _
      $region32: #{tpu_custom_call.1} parent=5 // pred_fallthru
        _
      %p756 = scmp.le.s32.totalorder 2, %s14
      // Predicated region
      $region49: #{tpu_custom_call.1} parent=5 // pred_check
        %p757 = pneg %p756
      $region50: #{tpu_custom_call.1} parent=5 // pred_check_branch
        %759 = sbr.rel (%p757) target = $region52
      $region51: #{tpu_custom_call.1} parent=5 // pred_region
        %s760 = ssub.s32 %s14, 2
        // Predicated region
        $region53: #{tpu_custom_call.1} parent=51 // pred_check
          %p761 = pneg %p111
        $region54: #{tpu_custom_call.1} parent=51 // pred_check_branch
          %763 = sbr.rel (%p761) target = $region56
        $region55: #{tpu_custom_call.1} parent=51 // pred_region
          %s764 = sand.u32 %s96, 1
          %s765 = scalar_lea.sflag [#allocation4], %s764
          %s766 = sand.u32 %s96, 1
          %s767 = smul.addr %s766, 128
          %s768 = scalar_lea.vmem [#allocation8], %s767
          %769 = dma.done %s765, 2048
        $region56: #{tpu_custom_call.1} parent=51 // pred_fallthru
          _
      $region52: #{tpu_custom_call.1} parent=5 // pred_fallthru
        _
    $region6: #{tpu_custom_call.1} parent=1 // loop_footer
      %s18 = sadd.s32 1, %s14
    $region7: #{tpu_custom_call.1} parent=1 // loop_footer_branch
      %13 = sbr.rel target = $region3
    $region8: #{tpu_custom_call.1} parent=1 // loop_exit
      _
    %770 = vsyncpa [#allocation3], 1
    %s771 = scalar_lea.sflag [#allocation3], 1
    %772 = vsyncpa %s771, 1
    %773 = vsyncpa [#allocation6], 1
    %774 = vsyncpa [#allocation4], 1
    %s775 = scalar_lea.sflag [#allocation4], 1
    %776 = vsyncpa %s775, 1

// kernel: tpu_custom_call.1
$region0: #{tpu_custom_call.1}
  #allocation0 [shape = 'u32[]', space=smem, size = 0x4, offset = 0x4, fixed_abs, tag = 'smem constant byte address 0x4 - core index']
  #allocation1 [shape = 'u32[144,128]{1,0:T(1,128)}', space=vmem, size = 0x12000, scoped, tag = 'internal scratch']
  %s0 = inlined_call_operand.hbm [shape: f32[32,16], index: 0, kind: input, shape index: {}]
  %s1 = inlined_call_operand.hbm [shape: f32[16,32], index: 1, kind: input, shape index: {}]
  %s2 = inlined_call_operand.hbm [shape: f32[128,16], index: 2, kind: input, shape index: {}]
  %s3 = inlined_call_operand.hbm [shape: f32[8,32,32], index: 3, kind: output, shape index: {}]
  %s4 = sld [smem:[#allocation0]]
  $region57: #{tpu_custom_call.1} parent=0
    _
  %s6 = ssub.s32 1, %s4
  %s7 = scalar_select 0, %s6, %s4
  $region1: #{tpu_custom_call.1} parent=0
    #allocation2 [shape = 'u8[16384]{0}', space=vmem, size = 0x4000, scoped, tag = 'input window, operand 0, single buffered']
    #allocation3 [shape = 's32[2]{0}', space=sflag, size = 0x8, scoped, tag = 'scoped memory for tpu_custom_call.1']
    #allocation4 [shape = 's32[2]{0}', space=sflag, size = 0x8, scoped, tag = 'scoped memory for tpu_custom_call.1']
    #allocation5 [shape = 'u8[8192]{0}', space=vmem, size = 0x2000, scoped, tag = 'input window, operand 1, single buffered']
    #allocation6 [shape = 's32[1]{0}', space=sflag, size = 0x4, scoped, tag = 'scoped memory for tpu_custom_call.1']
    #allocation7 [shape = 'u8[65536]{0}', space=vmem, size = 0x10000, scoped, tag = 'input window, operand 2']
    #allocation8 [shape = 'u8[131072]{0}', space=vmem, size = 0x20000, scoped, tag = 'output window, operand 0']
    %8 = vsyncpa [#allocation3], 0
    %9 = vsyncpa [#allocation6], 0
    %10 = vsyncpa [#allocation4], 0
    %s11 = scalar_lea.sflag [#allocation4], 1
    %12 = vsyncpa %s11, 0
    loop: start=0, step=1, limit=4
    $region2: #{tpu_custom_call.1} parent=1 // loop_pre_header
      _
    $region3: #{tpu_custom_call.1} parent=1 // loop_header
      %s14 = sphi 0, %s18
      %p15 = scmp.ge.s32.totalorder %s14, 4
      %s22 = sphi 0, %s22
      %s24 = sphi 0, %s22
      %s25 = sphi 0, %s24
      %s39 = sphi 0, %s25
      %s43 = sphi 0, %s43
      %s45 = sphi 0, %s43
      %s46 = sphi 0, %s45
      %s60 = sphi 0, %s46
      %s66 = sphi 0, %s68
      %s69 = sphi 0, %s66
      %s70 = sphi 0, %s69
      %s86 = sphi 0, %s70
      %s92 = sphi 0, %s94
      %s95 = sphi 0, %s92
      %s96 = sphi 0, %s95
      %s112 = sphi 0, %s96
    $region4: #{tpu_custom_call.1} parent=1 // loop_header_branch
      %17 = sbr.rel (%p15) target = $region8
    $region5: #{tpu_custom_call.1} parent=1 // loop_body
      %s19 = ssub.s32 %s14, 1
      %s20 = ssub.s32 %s14, 2
      %s21 = sadd.s32 %s14, 1
      %s23 = sadd.s32 %s22, 1
      %p26 = scmp.eq.s32.totalorder %s14, 1
      %p27 = scmp.ne.s32.totalorder %s22, %s24
      %p28 = scmp.eq.s32.totalorder %s14, 0
      %p29 = por %p27, %p28
      %p30 = scmp.ne.s32.totalorder %s22, %s24
      %p31 = scmp.eq.s32.totalorder %s19, 1
      %p32 = por %p30, %p31
      %p33 = scmp.ne.s32.totalorder %s24, %s25
      %p34 = scmp.eq.s32.totalorder %s19, 0
      %p35 = por %p33, %p34
      %p36 = scmp.ne.s32.totalorder %s24, %s25
      %p37 = scmp.eq.s32.totalorder %s20, 1
      %p38 = por %p36, %p37
      %p40 = scmp.ne.s32.totalorder %s25, %s39
      %p41 = scmp.eq.s32.totalorder %s20, 0
      %p42 = por %p40, %p41
      %s44 = sadd.s32 %s43, 1
      %p47 = scmp.eq.s32.totalorder %s14, 1
      %p48 = scmp.ne.s32.totalorder %s43, %s45
      %p49 = scmp.eq.s32.totalorder %s14, 0
      %p50 = por %p48, %p49
      %p51 = scmp.ne.s32.totalorder %s43, %s45
      %p52 = scmp.eq.s32.totalorder %s19, 1
      %p53 = por %p51, %p52
      %p54 = scmp.ne.s32.totalorder %s45, %s46
      %p55 = scmp.eq.s32.totalorder %s19, 0
      %p56 = por %p54, %p55
      %p57 = scmp.ne.s32.totalorder %s45, %s46
      %p58 = scmp.eq.s32.totalorder %s20, 1
      %p59 = por %p57, %p58
      %p61 = scmp.ne.s32.totalorder %s46, %s60
      %p62 = scmp.eq.s32.totalorder %s20, 0
      %p63 = por %p61, %p62
      %s64 = ssub.s32 %s14, %s21
      %p65 = scmp.eq.s32.totalorder %s64, 0
      %s67 = sadd.s32 %s66, 1
      %s68 = scalar_select %p65, %s66, %s67
      %p71 = pneg %p65
      %p72 = scmp.eq.s32.totalorder %s14, 1
      %p73 = por %p71, %p72
      %p74 = scmp.ne.s32.totalorder %s66, %s69
      %p75 = scmp.eq.s32.totalorder %s14, 0
      %p76 = por %p74, %p75
      %p77 = scmp.ne.s32.totalorder %s66, %s69
      %p78 = scmp.eq.s32.totalorder %s19, 1
      %p79 = por %p77, %p78
      %p80 = scmp.ne.s32.totalorder %s69, %s70
      %p81 = scmp.eq.s32.totalorder %s19, 0
      %p82 = por %p80, %p81
      %p83 = scmp.ne.s32.totalorder %s69, %s70
      %p84 = scmp.eq.s32.totalorder %s20, 1
      %p85 = por %p83, %p84
      %p87 = scmp.ne.s32.totalorder %s70, %s86
      %p88 = scmp.eq.s32.totalorder %s20, 0
      %p89 = por %p87, %p88
      %s90 = ssub.s32 %s14, %s21
      %p91 = scmp.eq.s32.totalorder %s90, 0
      %s93 = sadd.s32 %s92, 1
      %s94 = scalar_select %p91, %s92, %s93
      %p97 = pneg %p91
      %p98 = scmp.eq.s32.totalorder %s14, 1
      %p99 = por %p97, %p98
      %p100 = scmp.ne.s32.totalorder %s92, %s95
      %p101 = scmp.eq.s32.totalorder %s14, 0
      %p102 = por %p100, %p101
      %p103 = scmp.ne.s32.totalorder %s92, %s95
      %p104 = scmp.eq.s32.totalorder %s19, 1
      %p105 = por %p103, %p104
      %p106 = scmp.ne.s32.totalorder %s95, %s96
      %p107 = scmp.eq.s32.totalorder %s19, 0
      %p108 = por %p106, %p107
      %p109 = scmp.ne.s32.totalorder %s95, %s96
      %p110 = scmp.eq.s32.totalorder %s20, 1
      %p111 = por %p109, %p110
      %p113 = scmp.ne.s32.totalorder %s96, %s112
      %p114 = scmp.eq.s32.totalorder %s20, 0
      %p115 = por %p113, %p114
      %p116 = scmp.le.s32.totalorder 1, %s14
      %p117 = scmp.lt.s32.totalorder %s14, 3
      %p118 = pnand %p116, %p117
      %p119 = pneg %p118
      // Predicated region
      $region9: #{tpu_custom_call.1} parent=5 // pred_check
        _
      $region10: #{tpu_custom_call.1} parent=5 // pred_check_branch
        %121 = sbr.rel (%p118) target = $region12
      $region11: #{tpu_custom_call.1} parent=5 // pred_region
        %s122 = ssub.s32 %s14, 1
        // Predicated region
        $region13: #{tpu_custom_call.1} parent=11 // pred_check
          %p123 = pneg %p35
        $region14: #{tpu_custom_call.1} parent=11 // pred_check_branch
          %125 = sbr.rel (%p123) target = $region16
        $region15: #{tpu_custom_call.1} parent=11 // pred_region
          %s127 = ssub.s32 512, 512
          %128 = vsyncadd [#allocation3], %s127
          %s129 = sshll.u32 [#allocation2], 4
          %s130 = int_to_ptr.vmem [resolvable:$true] %s129
          %135 = dma.hbm_to_vmem [thread:$0]  %s0, 512, %s130, [#allocation3], 128, 128, 8
        $region16: #{tpu_custom_call.1} parent=11 // pred_fallthru
          _
        // Predicated region
        $region17: #{tpu_custom_call.1} parent=11 // pred_check
          %p136 = pneg %p56
        $region18: #{tpu_custom_call.1} parent=11 // pred_check_branch
          %138 = sbr.rel (%p136) target = $region20
        $region19: #{tpu_custom_call.1} parent=11 // pred_region
          %s140 = ssub.s32 256, 256
          %141 = vsyncadd [#allocation6], %s140
          %s142 = sshll.u32 [#allocation5], 4
          %s143 = int_to_ptr.vmem [resolvable:$true] %s142
          %148 = dma.hbm_to_vmem [thread:$0]  %s1, 256, %s143, [#allocation6], 128, 128, 8
        $region20: #{tpu_custom_call.1} parent=11 // pred_fallthru
          _
      $region12: #{tpu_custom_call.1} parent=5 // pred_fallthru
        _
      %p149 = scmp.lt.s32.totalorder %s14, 2
      // Predicated region
      $region21: #{tpu_custom_call.1} parent=5 // pred_check
        %p150 = pneg %p149
      $region22: #{tpu_custom_call.1} parent=5 // pred_check_branch
        %152 = sbr.rel (%p150) target = $region24
      $region23: #{tpu_custom_call.1} parent=5 // pred_region
        // Predicated region
        $region25: #{tpu_custom_call.1} parent=23 // pred_check
          %p153 = pneg %p76
        $region26: #{tpu_custom_call.1} parent=23 // pred_check_branch
          %155 = sbr.rel (%p153) target = $region28
        $region27: #{tpu_custom_call.1} parent=23 // pred_region
          %s156 = sand.u32 %s14, 1
          %s157 = scalar_lea.sflag [#allocation3], %s156
          %s158 = sand.u32 %s66, 1
          %s159 = smul.addr %s158, 64
          %s160 = scalar_lea.vmem [#allocation7], %s159
          %s161 = smul.u32 8, %s14
          %s163 = ssub.s32 1024, 1024
          %164 = vsyncadd %s157, %s163
          %s165 = smul.addr %s161, 128
          %s166 = scalar_lea.hbm %s2, %s165
          %s167 = sshll.u32 %s160, 4
          %s168 = int_to_ptr.vmem [resolvable:$true] %s167
          %173 = dma.hbm_to_vmem [thread:$0]  %s166, 1024, %s168, %s157, 128, 128, 8
        $region28: #{tpu_custom_call.1} parent=23 // pred_fallthru
          _
      $region24: #{tpu_custom_call.1} parent=5 // pred_fallthru
        _
      %p174 = scmp.le.s32.totalorder 1, %s14
      %p175 = scmp.lt.s32.totalorder %s14, 3
      %p176 = pnand %p174, %p175
      %p177 = pneg %p176
      // Predicated region
      $region29: #{tpu_custom_call.1} parent=5 // pred_check
        _
      $region30: #{tpu_custom_call.1} parent=5 // pred_check_branch
        %179 = sbr.rel (%p176) target = $region32
      $region31: #{tpu_custom_call.1} parent=5 // pred_region
        %s180 = ssub.s32 %s14, 1
        // Predicated region
        $region33: #{tpu_custom_call.1} parent=31 // pred_check
          %p181 = pneg %p35
        $region34: #{tpu_custom_call.1} parent=31 // pred_check_branch
          %183 = sbr.rel (%p181) target = $region36
        $region35: #{tpu_custom_call.1} parent=31 // pred_region
          %184 = dma.done [#allocation3], 512
        $region36: #{tpu_custom_call.1} parent=31 // pred_fallthru
          _
        // Predicated region
        $region37: #{tpu_custom_call.1} parent=31 // pred_check
          %p185 = pneg %p56
        $region38: #{tpu_custom_call.1} parent=31 // pred_check_branch
          %187 = sbr.rel (%p185) target = $region40
        $region39: #{tpu_custom_call.1} parent=31 // pred_region
          %188 = dma.done [#allocation6], 256
        $region40: #{tpu_custom_call.1} parent=31 // pred_fallthru
          _
        %s189 = sand.u32 %s19, 1
        %s190 = scalar_lea.sflag [#allocation3], %s189
        %s191 = sand.u32 %s69, 1
        %s192 = smul.addr %s191, 64
        %s193 = scalar_lea.vmem [#allocation7], %s192
        // Predicated region
        $region41: #{tpu_custom_call.1} parent=31 // pred_check
          %p194 = pneg %p82
        $region42: #{tpu_custom_call.1} parent=31 // pred_check_branch
          %196 = sbr.rel (%p194) target = $region44
        $region43: #{tpu_custom_call.1} parent=31 // pred_region
          %197 = dma.done %s190, 1024
        $region44: #{tpu_custom_call.1} parent=31 // pred_fallthru
          _
        %p198 = pneg %p35
        %p199 = pneg %p32
        %p200 = pneg %p56
        %p201 = pneg %p53
        %s202 = sand.u32 %s19, 1
        %s203 = scalar_lea.sflag [#allocation3], %s202
        %s204 = sand.u32 %s69, 1
        %s205 = smul.addr %s204, 64
        %s206 = scalar_lea.vmem [#allocation7], %s205
        %p207 = pneg %p82
        %p208 = pneg %p79
        %p209 = pneg %p108
        %p210 = pneg %p105
        %s211 = sand.u32 %s95, 1
        %s212 = scalar_lea.sflag [#allocation4], %s211
        %s213 = sand.u32 %s95, 1
        %s214 = smul.addr %s213, 128
        %s215 = scalar_lea.vmem [#allocation8], %s214
        %s216 = smul.u32 8, %s19
        %s217 = smul.u32 4, %s19
        %v218 = vld [vmem:[#allocation2] sm:$0xff]
        %v219 = vld [vmem:[#allocation2 + $0x8] sm:$0xff]
        %v220 = vld [vmem:[#allocation2 + $0x10] sm:$0xff]
        %v221 = vld [vmem:[#allocation2 + $0x18] sm:$0xff]
        %v222 = vld [vmem:[#allocation5] sm:$0xff]
        %v223 = vld [vmem:[#allocation5 + $0x8] sm:$0xff]
        %v224 = vld [vmem:[%s193] sm:$0xff]
        %v225 = vld [vmem:[%s193 + $0x8] sm:$0xff]
        %v226 = vld [vmem:[%s193 + $0x10] sm:$0xff]
        %v227 = vld [vmem:[%s193 + $0x18] sm:$0xff]
        %v228 = vld [vmem:[%s193 + $0x20] sm:$0xff]
        %v229 = vld [vmem:[%s193 + $0x28] sm:$0xff]
        %v230 = vld [vmem:[%s193 + $0x30] sm:$0xff]
        %v231 = vld [vmem:[%s193 + $0x38] sm:$0xff]
        %vm232 = vcmask 130048
        %v234 = vsel %vm232, %v224, 0
        %v237 = vsel %vm232, %v225, 0
        %v240 = vsel %vm232, %v226, 0
        %v243 = vsel %vm232, %v227, 0
        %v246 = vsel %vm232, %v228, 0
        %v249 = vsel %vm232, %v229, 0
        %v252 = vsel %vm232, %v230, 0
        %v255 = vsel %vm232, %v231, 0
        %257 = vmatprep.subr.mxu0 0.0
        %258 = vmatpush1.msra.mxu0 %v222
        %259 = vmatprep.subr.mxu0 0.0
        %260 = vmatpush1.msra.mxu0 %v223
        %261 = vmatprep.subr.mxu0 0.0
        %262 = vmatpush1.msra.mxu0 0.0
        %263 = vmatprep.subr.mxu0 0.0
        %264 = vmatpush1.msra.mxu0 0.0
        %265 = vmatprep.subr.mxu0 0.0
        %266 = vmatpush1.msra.mxu0 0.0
        %267 = vmatprep.subr.mxu0 0.0
        %268 = vmatpush1.msra.mxu0 0.0
        %269 = vmatprep.subr.mxu0 0.0
        %270 = vmatpush1.msra.mxu0 0.0
        %271 = vmatprep.subr.mxu0 0.0
        %272 = vmatpush1.msra.mxu0 0.0
        %273 = vmatprep.subr.mxu0 0.0
        %274 = vmatpush1.msra.mxu0 0.0
        %275 = vmatprep.subr.mxu0 0.0
        %276 = vmatpush1.msra.mxu0 0.0
        %277 = vmatprep.subr.mxu0 0.0
        %278 = vmatpush1.msra.mxu0 0.0
        %279 = vmatprep.subr.mxu0 0.0
        %280 = vmatpush1.msra.mxu0 0.0
        %281 = vmatprep.subr.mxu0 0.0
        %282 = vmatpush1.msra.mxu0 0.0
        %283 = vmatprep.subr.mxu0 0.0
        %284 = vmatpush1.msra.mxu0 0.0
        %285 = vmatprep.subr.mxu0 0.0
        %286 = vmatpush1.msra.mxu0 0.0
        %287 = vmatprep.subr.mxu0 0.0
        %288 = vmatpush1.msra.mxu0 0.0
        %289 = vmatprep.subr.mxu0 0.0
        %290 = vmatpush1.msra.mxu0 0.0
        %291 = vmatprep.subr.mxu0 0.0
        %292 = vmatpush1.msra.mxu0 0.0
        %293 = vmatprep.subr.mxu0 0.0
        %294 = vmatpush1.msra.mxu0 0.0
        %295 = vmatprep.subr.mxu0 0.0
        %296 = vmatpush1.msra.mxu0 0.0
        %297 = vmatprep.subr.mxu0 0.0
        %298 = vmatpush1.msra.mxu0 0.0
        %299 = vmatprep.subr.mxu0 0.0
        %300 = vmatpush1.msra.mxu0 0.0
        %301 = vmatprep.subr.mxu0 0.0
        %302 = vmatpush1.msra.mxu0 0.0
        %303 = vmatprep.subr.mxu0 0.0
        %304 = vmatpush1.msra.mxu0 0.0
        %305 = vmatprep.subr.mxu0 0.0
        %306 = vmatpush1.msra.mxu0 0.0
        %307 = vmatprep.subr.mxu0 0.0
        %308 = vmatpush1.msra.mxu0 0.0
        %309 = vmatprep.subr.mxu0 0.0
        %310 = vmatpush1.msra.mxu0 0.0
        %311 = vmatprep.subr.mxu0 0.0
        %312 = vmatpush1.msra.mxu0 0.0
        %313 = vmatprep.subr.mxu0 0.0
        %314 = vmatpush1.msra.mxu0 0.0
        %315 = vmatprep.subr.mxu0 0.0
        %316 = vmatpush1.msra.mxu0 0.0
        %317 = vmatprep.subr.mxu0 0.0
        %318 = vmatpush1.msra.mxu0 0.0
        %319 = vmatprep.subr.mxu0 0.0
        %320 = vmatpush1.msra.mxu0 0.0
        %321 = vmatprep.mubr.f32.mxu0 0.0
        %322 = vmatmul.mubr.f32.gmra.mrb[0].mxu0 %v234
        %v323 = vpop.f32.mrb[0].mxu0
        %v324 = vadd.f32 0.0, %v323
        %v325 = vpop.f32.mrb[0].mxu0
        %326 = vmatprep.mubr.f32.mxu0 0.0
        %327 = vmatmul.mubr.f32.gmra.mrb[0].mxu0 %v237
        %v328 = vpop.f32.mrb[0].mxu0
        %v329 = vadd.f32 0.0, %v328
        %v330 = vpop.f32.mrb[0].mxu0
        %331 = vmatprep.mubr.f32.mxu0 0.0
        %332 = vmatmul.mubr.f32.gmra.mrb[0].mxu0 %v240
        %v333 = vpop.f32.mrb[0].mxu0
        %v334 = vadd.f32 0.0, %v333
        %v335 = vpop.f32.mrb[0].mxu0
        %336 = vmatprep.mubr.f32.mxu0 0.0
        %337 = vmatmul.mubr.f32.gmra.mrb[0].mxu0 %v243
        %v338 = vpop.f32.mrb[0].mxu0
        %v339 = vadd.f32 0.0, %v338
        %v340 = vpop.f32.mrb[0].mxu0
        %341 = vmatprep.mubr.f32.mxu0 0.0
        %342 = vmatmul.mubr.f32.gmra.mrb[0].mxu0 %v246
        %v343 = vpop.f32.mrb[0].mxu0
        %v344 = vadd.f32 0.0, %v343
        %v345 = vpop.f32.mrb[0].mxu0
        %346 = vmatprep.mubr.f32.mxu0 0.0
        %347 = vmatmul.mubr.f32.gmra.mrb[0].mxu0 %v249
        %v348 = vpop.f32.mrb[0].mxu0
        %v349 = vadd.f32 0.0, %v348
        %v350 = vpop.f32.mrb[0].mxu0
        %351 = vmatprep.mubr.f32.mxu0 0.0
        %352 = vmatmul.mubr.f32.gmra.mrb[0].mxu0 %v252
        %v353 = vpop.f32.mrb[0].mxu0
        %v354 = vadd.f32 0.0, %v353
        %v355 = vpop.f32.mrb[0].mxu0
        %356 = vmatprep.mubr.f32.mxu0 0.0
        %357 = vmatmul.mubr.f32.gmra.mrb[0].mxu0 %v255
        %v358 = vpop.f32.mrb[0].mxu0
        %v359 = vadd.f32 0.0, %v358
        %v360 = vpop.f32.mrb[0].mxu0
        %361 = vdwg.mxu0
        %v363 = vsel %vm232, %v218, 0
        %v366 = vsel %vm232, %v219, 0
        %v369 = vsel %vm232, %v220, 0
        %v372 = vsel %vm232, %v221, 0
        %374 = vmatprep.subr.mxu0 0.0
        %375 = vmatpush1.msra.mxu0 %v324
        %376 = vmatprep.subr.mxu0 0.0
        %377 = vmatpush1.msra.mxu0 %v329
        %378 = vmatprep.subr.mxu0 0.0
        %379 = vmatpush1.msra.mxu0 0.0
        %380 = vmatprep.subr.mxu0 0.0
        %381 = vmatpush1.msra.mxu0 0.0
        %382 = vmatprep.subr.mxu0 0.0
        %383 = vmatpush1.msra.mxu0 0.0
        %384 = vmatprep.subr.mxu0 0.0
        %385 = vmatpush1.msra.mxu0 0.0
        %386 = vmatprep.subr.mxu0 0.0
        %387 = vmatpush1.msra.mxu0 0.0
        %388 = vmatprep.subr.mxu0 0.0
        %389 = vmatpush1.msra.mxu0 0.0
        %390 = vmatprep.subr.mxu0 0.0
        %391 = vmatpush1.msra.mxu0 0.0
        %392 = vmatprep.subr.mxu0 0.0
        %393 = vmatpush1.msra.mxu0 0.0
        %394 = vmatprep.subr.mxu0 0.0
        %395 = vmatpush1.msra.mxu0 0.0
        %396 = vmatprep.subr.mxu0 0.0
        %397 = vmatpush1.msra.mxu0 0.0
        %398 = vmatprep.subr.mxu0 0.0
        %399 = vmatpush1.msra.mxu0 0.0
        %400 = vmatprep.subr.mxu0 0.0
        %401 = vmatpush1.msra.mxu0 0.0
        %402 = vmatprep.subr.mxu0 0.0
        %403 = vmatpush1.msra.mxu0 0.0
        %404 = vmatprep.subr.mxu0 0.0
        %405 = vmatpush1.msra.mxu0 0.0
        %406 = vmatprep.subr.mxu0 0.0
        %407 = vmatpush1.msra.mxu0 0.0
        %408 = vmatprep.subr.mxu0 0.0
        %409 = vmatpush1.msra.mxu0 0.0
        %410 = vmatprep.subr.mxu0 0.0
        %411 = vmatpush1.msra.mxu0 0.0
        %412 = vmatprep.subr.mxu0 0.0
        %413 = vmatpush1.msra.mxu0 0.0
        %414 = vmatprep.subr.mxu0 0.0
        %415 = vmatpush1.msra.mxu0 0.0
        %416 = vmatprep.subr.mxu0 0.0
        %417 = vmatpush1.msra.mxu0 0.0
        %418 = vmatprep.subr.mxu0 0.0
        %419 = vmatpush1.msra.mxu0 0.0
        %420 = vmatprep.subr.mxu0 0.0
        %421 = vmatpush1.msra.mxu0 0.0
        %422 = vmatprep.subr.mxu0 0.0
        %423 = vmatpush1.msra.mxu0 0.0
        %424 = vmatprep.subr.mxu0 0.0
        %425 = vmatpush1.msra.mxu0 0.0
        %426 = vmatprep.subr.mxu0 0.0
        %427 = vmatpush1.msra.mxu0 0.0
        %428 = vmatprep.subr.mxu0 0.0
        %429 = vmatpush1.msra.mxu0 0.0
        %430 = vmatprep.subr.mxu0 0.0
        %431 = vmatpush1.msra.mxu0 0.0
        %432 = vmatprep.subr.mxu0 0.0
        %433 = vmatpush1.msra.mxu0 0.0
        %434 = vmatprep.subr.mxu0 0.0
        %435 = vmatpush1.msra.mxu0 0.0
        %436 = vmatprep.subr.mxu0 0.0
        %437 = vmatpush1.msra.mxu0 0.0
        %438 = vmatprep.mubr.f32.mxu0 0.0
        %439 = vmatmul.mubr.f32.gmra.mrb[0].mxu0 %v363
        %v440 = vpop.f32.mrb[0].mxu0
        %v441 = vadd.f32 0.0, %v440
        %v442 = vpop.f32.mrb[0].mxu0
        %443 = vmatprep.mubr.f32.mxu0 0.0
        %444 = vmatmul.mubr.f32.gmra.mrb[0].mxu0 %v366
        %v445 = vpop.f32.mrb[0].mxu0
        %v446 = vadd.f32 0.0, %v445
        %v447 = vpop.f32.mrb[0].mxu0
        %448 = vmatprep.mubr.f32.mxu0 0.0
        %449 = vmatmul.mubr.f32.gmra.mrb[0].mxu0 %v369
        %v450 = vpop.f32.mrb[0].mxu0
        %v451 = vadd.f32 0.0, %v450
        %v452 = vpop.f32.mrb[0].mxu0
        %453 = vmatprep.mubr.f32.mxu0 0.0
        %454 = vmatmul.mubr.f32.gmra.mrb[0].mxu0 %v372
        %v455 = vpop.f32.mrb[0].mxu0
        %v456 = vadd.f32 0.0, %v455
        %v457 = vpop.f32.mrb[0].mxu0
        %458 = vdwg.mxu0
        %vm459 = vcmask 261120
        %460 = vst.msk [vmem:[%s215] sm:$0xff] %vm459, %v441
        %461 = vst.msk [vmem:[%s215 + $0x8] sm:$0xff] %vm459, %v446
        %462 = vst.msk [vmem:[%s215 + $0x10] sm:$0xff] %vm459, %v451
        %463 = vst.msk [vmem:[%s215 + $0x18] sm:$0xff] %vm459, %v456
        %464 = vmatprep.subr.mxu0 0.0
        %465 = vmatpush1.msra.mxu0 %v334
        %466 = vmatprep.subr.mxu0 0.0
        %467 = vmatpush1.msra.mxu0 %v339
        %468 = vmatprep.subr.mxu0 0.0
        %469 = vmatpush1.msra.mxu0 0.0
        %470 = vmatprep.subr.mxu0 0.0
        %471 = vmatpush1.msra.mxu0 0.0
        %472 = vmatprep.subr.mxu0 0.0
        %473 = vmatpush1.msra.mxu0 0.0
        %474 = vmatprep.subr.mxu0 0.0
        %475 = vmatpush1.msra.mxu0 0.0
        %476 = vmatprep.subr.mxu0 0.0
        %477 = vmatpush1.msra.mxu0 0.0
        %478 = vmatprep.subr.mxu0 0.0
        %479 = vmatpush1.msra.mxu0 0.0
        %480 = vmatprep.subr.mxu0 0.0
        %481 = vmatpush1.msra.mxu0 0.0
        %482 = vmatprep.subr.mxu0 0.0
        %483 = vmatpush1.msra.mxu0 0.0
        %484 = vmatprep.subr.mxu0 0.0
        %485 = vmatpush1.msra.mxu0 0.0
        %486 = vmatprep.subr.mxu0 0.0
        %487 = vmatpush1.msra.mxu0 0.0
        %488 = vmatprep.subr.mxu0 0.0
        %489 = vmatpush1.msra.mxu0 0.0
        %490 = vmatprep.subr.mxu0 0.0
        %491 = vmatpush1.msra.mxu0 0.0
        %492 = vmatprep.subr.mxu0 0.0
        %493 = vmatpush1.msra.mxu0 0.0
        %494 = vmatprep.subr.mxu0 0.0
        %495 = vmatpush1.msra.mxu0 0.0
        %496 = vmatprep.subr.mxu0 0.0
        %497 = vmatpush1.msra.mxu0 0.0
        %498 = vmatprep.subr.mxu0 0.0
        %499 = vmatpush1.msra.mxu0 0.0
        %500 = vmatprep.subr.mxu0 0.0
        %501 = vmatpush1.msra.mxu0 0.0
        %502 = vmatprep.subr.mxu0 0.0
        %503 = vmatpush1.msra.mxu0 0.0
        %504 = vmatprep.subr.mxu0 0.0
        %505 = vmatpush1.msra.mxu0 0.0
        %506 = vmatprep.subr.mxu0 0.0
        %507 = vmatpush1.msra.mxu0 0.0
        %508 = vmatprep.subr.mxu0 0.0
        %509 = vmatpush1.msra.mxu0 0.0
        %510 = vmatprep.subr.mxu0 0.0
        %511 = vmatpush1.msra.mxu0 0.0
        %512 = vmatprep.subr.mxu0 0.0
        %513 = vmatpush1.msra.mxu0 0.0
        %514 = vmatprep.subr.mxu0 0.0
        %515 = vmatpush1.msra.mxu0 0.0
        %516 = vmatprep.subr.mxu0 0.0
        %517 = vmatpush1.msra.mxu0 0.0
        %518 = vmatprep.subr.mxu0 0.0
        %519 = vmatpush1.msra.mxu0 0.0
        %520 = vmatprep.subr.mxu0 0.0
        %521 = vmatpush1.msra.mxu0 0.0
        %522 = vmatprep.subr.mxu0 0.0
        %523 = vmatpush1.msra.mxu0 0.0
        %524 = vmatprep.subr.mxu0 0.0
        %525 = vmatpush1.msra.mxu0 0.0
        %526 = vmatprep.subr.mxu0 0.0
        %527 = vmatpush1.msra.mxu0 0.0
        %528 = vmatprep.mubr.f32.mxu0 0.0
        %529 = vmatmul.mubr.f32.gmra.mrb[0].mxu0 %v363
        %v530 = vpop.f32.mrb[0].mxu0
        %v531 = vadd.f32 0.0, %v530
        %v532 = vpop.f32.mrb[0].mxu0
        %533 = vmatprep.mubr.f32.mxu0 0.0
        %534 = vmatmul.mubr.f32.gmra.mrb[0].mxu0 %v366
        %v535 = vpop.f32.mrb[0].mxu0
        %v536 = vadd.f32 0.0, %v535
        %v537 = vpop.f32.mrb[0].mxu0
        %538 = vmatprep.mubr.f32.mxu0 0.0
        %539 = vmatmul.mubr.f32.gmra.mrb[0].mxu0 %v369
        %v540 = vpop.f32.mrb[0].mxu0
        %v541 = vadd.f32 0.0, %v540
        %v542 = vpop.f32.mrb[0].mxu0
        %543 = vmatprep.mubr.f32.mxu0 0.0
        %544 = vmatmul.mubr.f32.gmra.mrb[0].mxu0 %v372
        %v545 = vpop.f32.mrb[0].mxu0
        %v546 = vadd.f32 0.0, %v545
        %v547 = vpop.f32.mrb[0].mxu0
        %548 = vdwg.mxu0
        %s549 = scalar_lea.vmem %s215, 32 [#allocation8]
        %550 = vst.msk [vmem:[%s549] sm:$0xff] %vm459, %v531
        %551 = vst.msk [vmem:[%s549 + $0x8] sm:$0xff] %vm459, %v536
        %552 = vst.msk [vmem:[%s549 + $0x10] sm:$0xff] %vm459, %v541
        %553 = vst.msk [vmem:[%s549 + $0x18] sm:$0xff] %vm459, %v546
        %554 = vmatprep.subr.mxu0 0.0
        %555 = vmatpush1.msra.mxu0 %v344
        %556 = vmatprep.subr.mxu0 0.0
        %557 = vmatpush1.msra.mxu0 %v349
        %558 = vmatprep.subr.mxu0 0.0
        %559 = vmatpush1.msra.mxu0 0.0
        %560 = vmatprep.subr.mxu0 0.0
        %561 = vmatpush1.msra.mxu0 0.0
        %562 = vmatprep.subr.mxu0 0.0
        %563 = vmatpush1.msra.mxu0 0.0
        %564 = vmatprep.subr.mxu0 0.0
        %565 = vmatpush1.msra.mxu0 0.0
        %566 = vmatprep.subr.mxu0 0.0
        %567 = vmatpush1.msra.mxu0 0.0
        %568 = vmatprep.subr.mxu0 0.0
        %569 = vmatpush1.msra.mxu0 0.0
        %570 = vmatprep.subr.mxu0 0.0
        %571 = vmatpush1.msra.mxu0 0.0
        %572 = vmatprep.subr.mxu0 0.0
        %573 = vmatpush1.msra.mxu0 0.0
        %574 = vmatprep.subr.mxu0 0.0
        %575 = vmatpush1.msra.mxu0 0.0
        %576 = vmatprep.subr.mxu0 0.0
        %577 = vmatpush1.msra.mxu0 0.0
        %578 = vmatprep.subr.mxu0 0.0
        %579 = vmatpush1.msra.mxu0 0.0
        %580 = vmatprep.subr.mxu0 0.0
        %581 = vmatpush1.msra.mxu0 0.0
        %582 = vmatprep.subr.mxu0 0.0
        %583 = vmatpush1.msra.mxu0 0.0
        %584 = vmatprep.subr.mxu0 0.0
        %585 = vmatpush1.msra.mxu0 0.0
        %586 = vmatprep.subr.mxu0 0.0
        %587 = vmatpush1.msra.mxu0 0.0
        %588 = vmatprep.subr.mxu0 0.0
        %589 = vmatpush1.msra.mxu0 0.0
        %590 = vmatprep.subr.mxu0 0.0
        %591 = vmatpush1.msra.mxu0 0.0
        %592 = vmatprep.subr.mxu0 0.0
        %593 = vmatpush1.msra.mxu0 0.0
        %594 = vmatprep.subr.mxu0 0.0
        %595 = vmatpush1.msra.mxu0 0.0
        %596 = vmatprep.subr.mxu0 0.0
        %597 = vmatpush1.msra.mxu0 0.0
        %598 = vmatprep.subr.mxu0 0.0
        %599 = vmatpush1.msra.mxu0 0.0
        %600 = vmatprep.subr.mxu0 0.0
        %601 = vmatpush1.msra.mxu0 0.0
        %602 = vmatprep.subr.mxu0 0.0
        %603 = vmatpush1.msra.mxu0 0.0
        %604 = vmatprep.subr.mxu0 0.0
        %605 = vmatpush1.msra.mxu0 0.0
        %606 = vmatprep.subr.mxu0 0.0
        %607 = vmatpush1.msra.mxu0 0.0
        %608 = vmatprep.subr.mxu0 0.0
        %609 = vmatpush1.msra.mxu0 0.0
        %610 = vmatprep.subr.mxu0 0.0
        %611 = vmatpush1.msra.mxu0 0.0
        %612 = vmatprep.subr.mxu0 0.0
        %613 = vmatpush1.msra.mxu0 0.0
        %614 = vmatprep.subr.mxu0 0.0
        %615 = vmatpush1.msra.mxu0 0.0
        %616 = vmatprep.subr.mxu0 0.0
        %617 = vmatpush1.msra.mxu0 0.0
        %618 = vmatprep.mubr.f32.mxu0 0.0
        %619 = vmatmul.mubr.f32.gmra.mrb[0].mxu0 %v363
        %v620 = vpop.f32.mrb[0].mxu0
        %v621 = vadd.f32 0.0, %v620
        %v622 = vpop.f32.mrb[0].mxu0
        %623 = vmatprep.mubr.f32.mxu0 0.0
        %624 = vmatmul.mubr.f32.gmra.mrb[0].mxu0 %v366
        %v625 = vpop.f32.mrb[0].mxu0
        %v626 = vadd.f32 0.0, %v625
        %v627 = vpop.f32.mrb[0].mxu0
        %628 = vmatprep.mubr.f32.mxu0 0.0
        %629 = vmatmul.mubr.f32.gmra.mrb[0].mxu0 %v369
        %v630 = vpop.f32.mrb[0].mxu0
        %v631 = vadd.f32 0.0, %v630
        %v632 = vpop.f32.mrb[0].mxu0
        %633 = vmatprep.mubr.f32.mxu0 0.0
        %634 = vmatmul.mubr.f32.gmra.mrb[0].mxu0 %v372
        %v635 = vpop.f32.mrb[0].mxu0
        %v636 = vadd.f32 0.0, %v635
        %v637 = vpop.f32.mrb[0].mxu0
        %638 = vdwg.mxu0
        %s639 = scalar_lea.vmem %s215, 64 [#allocation8]
        %640 = vst.msk [vmem:[%s639] sm:$0xff] %vm459, %v621
        %641 = vst.msk [vmem:[%s639 + $0x8] sm:$0xff] %vm459, %v626
        %642 = vst.msk [vmem:[%s639 + $0x10] sm:$0xff] %vm459, %v631
        %643 = vst.msk [vmem:[%s639 + $0x18] sm:$0xff] %vm459, %v636
        %644 = vmatprep.subr.mxu0 0.0
        %645 = vmatpush1.msra.mxu0 %v354
        %646 = vmatprep.subr.mxu0 0.0
        %647 = vmatpush1.msra.mxu0 %v359
        %648 = vmatprep.subr.mxu0 0.0
        %649 = vmatpush1.msra.mxu0 0.0
        %650 = vmatprep.subr.mxu0 0.0
        %651 = vmatpush1.msra.mxu0 0.0
        %652 = vmatprep.subr.mxu0 0.0
        %653 = vmatpush1.msra.mxu0 0.0
        %654 = vmatprep.subr.mxu0 0.0
        %655 = vmatpush1.msra.mxu0 0.0
        %656 = vmatprep.subr.mxu0 0.0
        %657 = vmatpush1.msra.mxu0 0.0
        %658 = vmatprep.subr.mxu0 0.0
        %659 = vmatpush1.msra.mxu0 0.0
        %660 = vmatprep.subr.mxu0 0.0
        %661 = vmatpush1.msra.mxu0 0.0
        %662 = vmatprep.subr.mxu0 0.0
        %663 = vmatpush1.msra.mxu0 0.0
        %664 = vmatprep.subr.mxu0 0.0
        %665 = vmatpush1.msra.mxu0 0.0
        %666 = vmatprep.subr.mxu0 0.0
        %667 = vmatpush1.msra.mxu0 0.0
        %668 = vmatprep.subr.mxu0 0.0
        %669 = vmatpush1.msra.mxu0 0.0
        %670 = vmatprep.subr.mxu0 0.0
        %671 = vmatpush1.msra.mxu0 0.0
        %672 = vmatprep.subr.mxu0 0.0
        %673 = vmatpush1.msra.mxu0 0.0
        %674 = vmatprep.subr.mxu0 0.0
        %675 = vmatpush1.msra.mxu0 0.0
        %676 = vmatprep.subr.mxu0 0.0
        %677 = vmatpush1.msra.mxu0 0.0
        %678 = vmatprep.subr.mxu0 0.0
        %679 = vmatpush1.msra.mxu0 0.0
        %680 = vmatprep.subr.mxu0 0.0
        %681 = vmatpush1.msra.mxu0 0.0
        %682 = vmatprep.subr.mxu0 0.0
        %683 = vmatpush1.msra.mxu0 0.0
        %684 = vmatprep.subr.mxu0 0.0
        %685 = vmatpush1.msra.mxu0 0.0
        %686 = vmatprep.subr.mxu0 0.0
        %687 = vmatpush1.msra.mxu0 0.0
        %688 = vmatprep.subr.mxu0 0.0
        %689 = vmatpush1.msra.mxu0 0.0
        %690 = vmatprep.subr.mxu0 0.0
        %691 = vmatpush1.msra.mxu0 0.0
        %692 = vmatprep.subr.mxu0 0.0
        %693 = vmatpush1.msra.mxu0 0.0
        %694 = vmatprep.subr.mxu0 0.0
        %695 = vmatpush1.msra.mxu0 0.0
        %696 = vmatprep.subr.mxu0 0.0
        %697 = vmatpush1.msra.mxu0 0.0
        %698 = vmatprep.subr.mxu0 0.0
        %699 = vmatpush1.msra.mxu0 0.0
        %700 = vmatprep.subr.mxu0 0.0
        %701 = vmatpush1.msra.mxu0 0.0
        %702 = vmatprep.subr.mxu0 0.0
        %703 = vmatpush1.msra.mxu0 0.0
        %704 = vmatprep.subr.mxu0 0.0
        %705 = vmatpush1.msra.mxu0 0.0
        %706 = vmatprep.subr.mxu0 0.0
        %707 = vmatpush1.msra.mxu0 0.0
        %708 = vmatprep.mubr.f32.mxu0 0.0
        %709 = vmatmul.mubr.f32.gmra.mrb[0].mxu0 %v363
        %v710 = vpop.f32.mrb[0].mxu0
        %v711 = vadd.f32 0.0, %v710
        %v712 = vpop.f32.mrb[0].mxu0
        %713 = vmatprep.mubr.f32.mxu0 0.0
        %714 = vmatmul.mubr.f32.gmra.mrb[0].mxu0 %v366
        %v715 = vpop.f32.mrb[0].mxu0
        %v716 = vadd.f32 0.0, %v715
        %v717 = vpop.f32.mrb[0].mxu0
        %718 = vmatprep.mubr.f32.mxu0 0.0
        %719 = vmatmul.mubr.f32.gmra.mrb[0].mxu0 %v369
        %v720 = vpop.f32.mrb[0].mxu0
        %v721 = vadd.f32 0.0, %v720
        %v722 = vpop.f32.mrb[0].mxu0
        %723 = vmatprep.mubr.f32.mxu0 0.0
        %724 = vmatmul.mubr.f32.gmra.mrb[0].mxu0 %v372
        %v725 = vpop.f32.mrb[0].mxu0
        %v726 = vadd.f32 0.0, %v725
        %v727 = vpop.f32.mrb[0].mxu0
        %728 = vdwg.mxu0
        %s729 = scalar_lea.vmem %s215, 96 [#allocation8]
        %730 = vst.msk [vmem:[%s729] sm:$0xff] %vm459, %v711
        %731 = vst.msk [vmem:[%s729 + $0x8] sm:$0xff] %vm459, %v716
        %732 = vst.msk [vmem:[%s729 + $0x10] sm:$0xff] %vm459, %v721
        %733 = vst.msk [vmem:[%s729 + $0x18] sm:$0xff] %vm459, %v726
        %s734 = sand.u32 %s95, 1
        %s735 = scalar_lea.sflag [#allocation4], %s734
        %s736 = sand.u32 %s95, 1
        %s737 = smul.addr %s736, 128
        %s738 = scalar_lea.vmem [#allocation8], %s737
        // Predicated region
        $region45: #{tpu_custom_call.1} parent=31 // pred_check
          %p739 = pneg %p105
        $region46: #{tpu_custom_call.1} parent=31 // pred_check_branch
          %741 = sbr.rel (%p739) target = $region48
        $region47: #{tpu_custom_call.1} parent=31 // pred_region
          %s742 = smul.u32 4, %s19
          %s744 = ssub.s32 2048, 2048
          %745 = vsyncadd %s735, %s744
          %s746 = smul.addr %s742, 4
          %s747 = smul.addr %s746, 128
          %s748 = scalar_lea.hbm %s3, %s747
          %s749 = sshll.u32 %s738, 4
          %s750 = int_to_ptr.vmem [resolvable:$true] %s749
          %755 = dma.vmem_to_hbm [thread:$0]  %s750, 2048, %s748, %s735, 128, 128, 8
        $region48: #{tpu_custom_call.1} parent=31 // pred_fallthru
          _
      $region32: #{tpu_custom_call.1} parent=5 // pred_fallthru
        _
      %p756 = scmp.le.s32.totalorder 2, %s14
      // Predicated region
      $region49: #{tpu_custom_call.1} parent=5 // pred_check
        %p757 = pneg %p756
      $region50: #{tpu_custom_call.1} parent=5 // pred_check_branch
        %759 = sbr.rel (%p757) target = $region52
      $region51: #{tpu_custom_call.1} parent=5 // pred_region
        %s760 = ssub.s32 %s14, 2
        // Predicated region
        $region53: #{tpu_custom_call.1} parent=51 // pred_check
          %p761 = pneg %p111
        $region54: #{tpu_custom_call.1} parent=51 // pred_check_branch
          %763 = sbr.rel (%p761) target = $region56
        $region55: #{tpu_custom_call.1} parent=51 // pred_region
          %s764 = sand.u32 %s96, 1
          %s765 = scalar_lea.sflag [#allocation4], %s764
          %s766 = sand.u32 %s96, 1
          %s767 = smul.addr %s766, 128
          %s768 = scalar_lea.vmem [#allocation8], %s767
          %769 = dma.done %s765, 2048
        $region56: #{tpu_custom_call.1} parent=51 // pred_fallthru
          _
      $region52: #{tpu_custom_call.1} parent=5 // pred_fallthru
        _
    $region6: #{tpu_custom_call.1} parent=1 // loop_footer
      %s18 = sadd.s32 1, %s14
    $region7: #{tpu_custom_call.1} parent=1 // loop_footer_branch
      %13 = sbr.rel target = $region3
    $region8: #{tpu_custom_call.1} parent=1 // loop_exit
      _
    %770 = vsyncpa [#allocation3], 1
    %s771 = scalar_lea.sflag [#allocation3], 1
    %772 = vsyncpa %s771, 1
    %773 = vsyncpa [#allocation6], 1
    %774 = vsyncpa [#allocation4], 1
    %s775 = scalar_lea.sflag [#allocation4], 1
    %776 = vsyncpa %s775, 1

</llo_original>
